<compile_context>
chip_gen: v7x
topology: tpu7x:2x2x1
jax: 0.10.0
libtpu: 0.0.40
codegen_flags: <defaults>
</compile_context>

<pallas_src>
import jax
import jax.numpy as jnp
from jax.experimental import pallas as pl
from jax.experimental.pallas import tpu as pltpu

EPS = 1e-8
ALPHA = 0.25     # torch nn.PReLU() init value (kept fixed; deterministic init)


def _gln(x, gamma, beta, eps=EPS):
    """GroupNorm(1, C) == global layer norm over the whole (T, C) tile.

    Single reduction pass: biased var = E[x^2] - mean^2 (f32, clamped at 0)."""
    mean = jnp.mean(x)
    var = jnp.maximum(jnp.mean(x * x) - mean * mean, 0.0)
    return (x - mean) * jax.lax.rsqrt(var + eps) * gamma + beta


def _make_kernel(*, T, H, K, nsrc, n_blocks, off, max_pad):
    def kernel(dils_ref,                                        # SMEM prefetch
               fr_ref, encw_ref, lng_ref, lnb_ref, bnw_ref, bnb_ref,
               c1w_ref, c1b_ref, g1g_ref, g1b_ref,
               dww_ref, dwb_ref, g2g_ref, g2b_ref, rsw_ref, rsb_ref,
               ow_ref, ob_ref, dec_ref,
               out_ref,
               mix_ref, st_ref, buf_ref):
        j = pl.program_id(1)

        # ---- block 0 only: encoder matmul + gLN + bottleneck, halo init ----
        @pl.when(j == 0)
        def _encode():
            mix = jnp.dot(fr_ref[0].astype(jnp.float32), encw_ref[...],
                          preferred_element_type=jnp.float32)       # (T, N)
            mix_ref[...] = mix
            y = _gln(mix, lng_ref[...], lnb_ref[...])
            # bottleneck weight is zero-padded to (N, 2F): state = [feat | 0]
            st_ref[...] = (jnp.dot(y, bnw_ref[...],
                                   preferred_element_type=jnp.float32)
                           + bnb_ref[...])                          # (T, 2F)
            # zero only the halo rows of the depthwise scratch
            buf_ref[pl.ds(0, off), :] = jnp.zeros((off, H), jnp.float32)
            if max_pad > 0:
                buf_ref[pl.ds(off + T, max_pad), :] = jnp.zeros(
                    (max_pad, H), jnp.float32)

        # ---------------- TCN block j (state stays in VMEM) ----------------
        dilation = dils_ref[j]
        pad = dilation * ((K - 1) // 2)
        st = st_ref[...]                                            # (T, 2F)

        # 1x1 (F -> H; skip half of the state hits zero weight rows) + PReLU
        h = (jnp.dot(st, c1w_ref[0], preferred_element_type=jnp.float32)
             + c1b_ref[0])
        h = jnp.where(h >= 0, h, ALPHA * h)
        h = _gln(h, g1g_ref[0], g1b_ref[0])

        # depthwise dilated conv ('same'): zero halo lives in buf_ref
        buf_ref[pl.ds(off, T), :] = h
        dw = dww_ref[0]                                             # (K, H)
        acc = buf_ref[pl.ds(off - pad, T), :] * dw[0:1, :]          # tap 0
        for k in range(1, K):                                       # static
            acc = acc + (buf_ref[pl.ds(off - pad + k * dilation, T), :]
                         * dw[k:k + 1, :])
        h2 = acc + dwb_ref[0]
        h2 = jnp.where(h2 >= 0, h2, ALPHA * h2)
        h2 = _gln(h2, g2g_ref[0], g2b_ref[0])

        # merged residual + skip 1x1 (H -> 2F); in-place VMEM state update
        rs = (jnp.dot(h2, rsw_ref[0], preferred_element_type=jnp.float32)
              + rsb_ref[0])
        st_ref[...] = st + rs                               # [res+r | skip+s]

        # ---- last block only: PReLU + output 1x1 + mask + decoder matmul ----
        @pl.when(j == n_blocks - 1)
        def _decode():
            s = st_ref[...]
            s = jnp.where(s >= 0, s, ALPHA * s)
            # out weight zero-padded so only the skip half of the state is
            # read; all sources merged into one (2F, nsrc*N) lane-dense matmul.
            logits = (jnp.dot(s, ow_ref[...],
                              preferred_element_type=jnp.float32)
                      + ob_ref[...])                           # (T, nsrc*N)
            mix_t = jnp.concatenate([mix_ref[...]] * nsrc, axis=-1)
            masked = mix_t * jax.nn.sigmoid(logits)
            # block-diagonal decoder weight: both sources in one matmul,
            # lane-dense (T, nsrc*win) output frames.
            out_ref[0] = jnp.dot(masked, dec_ref[...],
                                 preferred_element_type=jnp.float32)
    return kernel


# ---------------------------------------------------------------------------
# Parameter initialization (deterministic, already in the packed kernel layout)
# ---------------------------------------------------------------------------
def init_params(key, cfg):
    N, F = cfg["encoder_dim"], cfg["feature_dim"]
    H, K = 4 * F, cfg["kernel"]
    nsrc, win = cfg["n_sources"], cfg["win_size"]
    layers, stack = cfg["layers"], cfg["stack"]
    n_blocks = layers * stack

    keys = list(jax.random.split(key, 6 + 8 * n_blocks))
    it = iter(keys)
    nxt = lambda: next(it)

    def xavier(k, shape):
        std = (2.0 / (shape[0] + shape[-1])) ** 0.5
        return std * jax.random.normal(k, shape, jnp.float32)

    def small(k, shape, scale=0.05):
        return scale * jax.random.normal(k, shape, jnp.float32)

    enc_w = xavier(nxt(), (win, N))
    bn_w = xavier(nxt(), (N, F))
    bn_b = small(nxt(), (1, F))
    out_w = xavier(nxt(), (F, nsrc * N))
    out_b = small(nxt(), (1, nsrc * N))
    dec_w = xavier(nxt(), (N, win))

    # block-diagonal decoder weight: both sources decoded by one matmul
    dec_bd = jnp.zeros((nsrc * N, nsrc * win), jnp.float32)
    for s in range(nsrc):
        dec_bd = dec_bd.at[s * N:(s + 1) * N, s * win:(s + 1) * win].set(dec_w)

    p = {
        "enc_w": enc_w,                                           # (win, N)
        "ln_g": jnp.ones((1, N), jnp.float32),
        "ln_b": jnp.zeros((1, N), jnp.float32),
        # bottleneck padded so it directly produces state = [feat | 0]
        "bn_w2": jnp.concatenate([bn_w, jnp.zeros((N, F), jnp.float32)], 1),
        "bn_b2": jnp.concatenate([bn_b, jnp.zeros((1, F), jnp.float32)], 1),
        # output 1x1 padded so only the skip half of the state is read,
        # with all sources merged along the lane axis
        "out_w2": jnp.concatenate(
            [jnp.zeros((F, nsrc * N), jnp.float32), out_w], axis=0),  # (2F, nsrc*N)
        "out_b2": out_b,                                          # (1, nsrc*N)
        "dec_bd": dec_bd,                                         # (nsrc*N, nsrc*win)
        "dils": jnp.asarray([2 ** (i % layers) for i in range(n_blocks)],
                            dtype=jnp.int32),
    }

    c1_w, c1_b, dw_w, dw_b, rs_w, rs_b = [], [], [], [], [], []
    for _ in range(n_blocks):
        c1 = xavier(nxt(), (F, H))
        # zero rows for the skip half of the state
        c1_w.append(jnp.concatenate([c1, jnp.zeros((F, H), jnp.float32)], 0))
        c1_b.append(small(nxt(), (1, H)))
        dw_w.append(0.5 * jax.random.normal(nxt(), (K, H), jnp.float32))
        dw_b.append(small(nxt(), (1, H)))
        res_w = xavier(nxt(), (H, F)); res_b = small(nxt(), (1, F))
        skip_w = xavier(nxt(), (H, F)); skip_b = small(nxt(), (1, F))
        rs_w.append(jnp.concatenate([res_w, skip_w], axis=1))     # (H, 2F)
        rs_b.append(jnp.concatenate([res_b, skip_b], axis=1))     # (1, 2F)

    p.update({
        "c1_w": jnp.stack(c1_w),                                  # (nb, 2F, H)
        "c1_b": jnp.stack(c1_b),                                  # (nb, 1, H)
        "g1_g": jnp.ones((n_blocks, 1, H), jnp.float32),
        "g1_b": jnp.zeros((n_blocks, 1, H), jnp.float32),
        "dw_w": jnp.stack(dw_w),                                  # (nb, K, H)
        "dw_b": jnp.stack(dw_b),
        "g2_g": jnp.ones((n_blocks, 1, H), jnp.float32),
        "g2_b": jnp.zeros((n_blocks, 1, H), jnp.float32),
        "rs_w": jnp.stack(rs_w),                                  # (nb, H, 2F)
        "rs_b": jnp.stack(rs_b),                                  # (nb, 1, 2F)
    })
    return p


# ---------------------------------------------------------------------------
# Forward pass: one fused pallas_call + tiny XLA framing / overlap-add
# ---------------------------------------------------------------------------
def make_forward(cfg):
    win, stride = cfg["win_size"], cfg["stride"]
    N, F, nsrc = cfg["encoder_dim"], cfg["feature_dim"], cfg["n_sources"]
    H, K = 4 * F, cfg["kernel"]
    layers, stack = cfg["layers"], cfg["stack"]
    n_blocks = layers * stack
    F2 = 2 * F
    max_pad = (2 ** (layers - 1)) * ((K - 1) // 2)
    off = max(8, ((max_pad + 7) // 8) * 8)        # 8-aligned halo start
    assert win == 2 * stride

    @jax.jit
    def forward(params, X):
        """X: (B, S) float32 audio -> (B, n_sources, S)."""
        B, S = X.shape

        # --- Conv_TasNet.pad (exact torch semantics) ---
        rest = win - (stride + S % win) % win
        L = S + rest + 2 * stride
        Xp = jnp.pad(X, ((0, 0), (stride, rest + stride)))        # (B, L)
        T = L // stride - 1
        chunks = Xp.reshape(B, T + 1, stride)
        # frames[t] = [chunk t | chunk t+1]  -> one (T,win)x(win,N) encoder dot
        frames = jnp.concatenate([chunks[:, :T], chunks[:, 1:]], axis=-1)

        kernel = _make_kernel(T=T, H=H, K=K, nsrc=nsrc, n_blocks=n_blocks,
                              off=off, max_pad=max_pad)

        grid_spec = pltpu.PrefetchScalarGridSpec(
            num_scalar_prefetch=1,                 # per-block dilations (SMEM)
            grid=(B, n_blocks),
            in_specs=[
                pl.BlockSpec((1, T, win), lambda b, j, d: (b, 0, 0)),   # frames
                pl.BlockSpec((win, N), lambda b, j, d: (0, 0)),         # enc_w
                pl.BlockSpec((1, N), lambda b, j, d: (0, 0)),           # ln_g
                pl.BlockSpec((1, N), lambda b, j, d: (0, 0)),           # ln_b
                pl.BlockSpec((N, F2), lambda b, j, d: (0, 0)),          # bn_w2
                pl.BlockSpec((1, F2), lambda b, j, d: (0, 0)),          # bn_b2
                pl.BlockSpec((1, F2, H), lambda b, j, d: (j, 0, 0)),    # c1_w
                pl.BlockSpec((1, 1, H), lambda b, j, d: (j, 0, 0)),     # c1_b
                pl.BlockSpec((1, 1, H), lambda b, j, d: (j, 0, 0)),     # g1_g
                pl.BlockSpec((1, 1, H), lambda b, j, d: (j, 0, 0)),     # g1_b
                pl.BlockSpec((1, K, H), lambda b, j, d: (j, 0, 0)),     # dw_w
                pl.BlockSpec((1, 1, H), lambda b, j, d: (j, 0, 0)),     # dw_b
                pl.BlockSpec((1, 1, H), lambda b, j, d: (j, 0, 0)),     # g2_g
                pl.BlockSpec((1, 1, H), lambda b, j, d: (j, 0, 0)),     # g2_b
                pl.BlockSpec((1, H, F2), lambda b, j, d: (j, 0, 0)),    # rs_w
                pl.BlockSpec((1, 1, F2), lambda b, j, d: (j, 0, 0)),    # rs_b
                pl.BlockSpec((F2, nsrc * N), lambda b, j, d: (0, 0)),   # out_w2
                pl.BlockSpec((1, nsrc * N), lambda b, j, d: (0, 0)),    # out_b2
                pl.BlockSpec((nsrc * N, nsrc * win), lambda b, j, d: (0, 0)),
            ],
            out_specs=pl.BlockSpec((1, T, nsrc * win),
                                   lambda b, j, d: (b, 0, 0)),
            scratch_shapes=[
                pltpu.VMEM((T, N), jnp.float32),                 # mixture
                pltpu.VMEM((T, F2), jnp.float32),                # [res | skip]
                pltpu.VMEM((off + T + max_pad, H), jnp.float32),  # dw halo buf
            ],
        )

        dec = pl.pallas_call(
            kernel,
            out_shape=jax.ShapeDtypeStruct((B, T, nsrc * win), jnp.float32),
            grid_spec=grid_spec,
            compiler_params=pltpu.CompilerParams(
                dimension_semantics=("parallel", "arbitrary"),
                vmem_limit_bytes=64 * 1024 * 1024),
        )(params["dils"], frames,
          params["enc_w"], params["ln_g"], params["ln_b"],
          params["bn_w2"], params["bn_b2"],
          params["c1_w"], params["c1_b"], params["g1_g"], params["g1_b"],
          params["dw_w"], params["dw_b"], params["g2_g"], params["g2_b"],
          params["rs_w"], params["rs_b"],
          params["out_w2"], params["out_b2"], params["dec_bd"])

        # --- overlap-add (ConvTranspose1d, stride = win//2); tiny wrapper op ---
        dec = dec.reshape(B, T, nsrc, win).transpose(0, 2, 1, 3)  # (B,nsrc,T,win)
        first, second = dec[..., :stride], dec[..., stride:]
        zero = jnp.zeros_like(first[:, :, :1])
        wave = (jnp.concatenate([first, zero], axis=2)
                + jnp.concatenate([zero, second], axis=2)).reshape(B, nsrc, L)
        return wave[:, :, stride:L - (rest + stride)]             # (B, nsrc, S)

    return forward


if __name__ == "__main__":
    cfg = dict(encoder_dim=64, feature_dim=32, sr=16000, win_length=2,
               layers=2, stack=2, kernel=3, n_sources=2, causal=False)
    cfg["win_size"] = int(cfg["sr"] * cfg["win_length"] / 1000)   # 32
    cfg["stride"] = cfg["win_size"] // 2                          # 16

    key = jax.random.PRNGKey(0)
    pkey, xkey = jax.random.split(key)
    params = init_params(pkey, cfg)
    forward = make_forward(cfg)

    X = jax.random.normal(xkey, (2, 200), jnp.float32)            # (B, S) audio
    out = jax.block_until_ready(forward(params, X))

    assert out.shape == (2, cfg["n_sources"], 200), out.shape
    assert bool(jnp.all(jnp.isfinite(out)))
    print("KERNEL_OK")
</pallas_src>

<mosaic_0001>
module attributes {stable_mosaic.version = 11 : i64} {
  func.func @kernel(%arg0: i32, %arg1: i32, %arg2: memref<4xi32, #tpu.memory_space<smem>>, %arg3: memref<1x14x32xf32, #tpu.memory_space<vmem>>, %arg4: memref<32x64xf32, #tpu.memory_space<vmem>>, %arg5: memref<1x64xf32, #tpu.memory_space<vmem>>, %arg6: memref<1x64xf32, #tpu.memory_space<vmem>>, %arg7: memref<64x64xf32, #tpu.memory_space<vmem>>, %arg8: memref<1x64xf32, #tpu.memory_space<vmem>>, %arg9: memref<1x64x128xf32, #tpu.memory_space<vmem>>, %arg10: memref<1x1x128xf32, #tpu.memory_space<vmem>>, %arg11: memref<1x1x128xf32, #tpu.memory_space<vmem>>, %arg12: memref<1x1x128xf32, #tpu.memory_space<vmem>>, %arg13: memref<1x3x128xf32, #tpu.memory_space<vmem>>, %arg14: memref<1x1x128xf32, #tpu.memory_space<vmem>>, %arg15: memref<1x1x128xf32, #tpu.memory_space<vmem>>, %arg16: memref<1x1x128xf32, #tpu.memory_space<vmem>>, %arg17: memref<1x128x64xf32, #tpu.memory_space<vmem>>, %arg18: memref<1x1x64xf32, #tpu.memory_space<vmem>>, %arg19: memref<64x128xf32, #tpu.memory_space<vmem>>, %arg20: memref<1x128xf32, #tpu.memory_space<vmem>>, %arg21: memref<128x64xf32, #tpu.memory_space<vmem>>, %arg22: memref<1x14x64xf32, #tpu.memory_space<vmem>>, %arg23: memref<14x64xf32, #tpu.memory_space<vmem>>, %arg24: memref<14x64xf32, #tpu.memory_space<vmem>>, %arg25: memref<24x128xf32, #tpu.memory_space<vmem>>) attributes {dimension_semantics = [#tpu.dimension_semantics<parallel>, #tpu.dimension_semantics<arbitrary>], iteration_bounds = array<i64: 2, 4>, scalar_prefetch = 1 : i64, scratch_operands = 3 : i64, tpu.core_type = #tpu.core_type<tc>, window_params = [{transform_indices = @transform_0, window_bounds = array<i64: 1, 14, 32>}, {pipeline_mode = #tpu.pipeline_mode<synchronous>, transform_indices = @transform_1, window_bounds = array<i64: 32, 64>}, {pipeline_mode = #tpu.pipeline_mode<synchronous>, transform_indices = @transform_2, window_bounds = array<i64: 1, 64>}, {pipeline_mode = #tpu.pipeline_mode<synchronous>, transform_indices = @transform_3, window_bounds = array<i64: 1, 64>}, {pipeline_mode = #tpu.pipeline_mode<synchronous>, transform_indices = @transform_4, window_bounds = array<i64: 64, 64>}, {pipeline_mode = #tpu.pipeline_mode<synchronous>, transform_indices = @transform_5, window_bounds = array<i64: 1, 64>}, {transform_indices = @transform_6, window_bounds = array<i64: 1, 64, 128>}, {transform_indices = @transform_7, window_bounds = array<i64: 1, 1, 128>}, {transform_indices = @transform_8, window_bounds = array<i64: 1, 1, 128>}, {transform_indices = @transform_9, window_bounds = array<i64: 1, 1, 128>}, {transform_indices = @transform_10, window_bounds = array<i64: 1, 3, 128>}, {transform_indices = @transform_11, window_bounds = array<i64: 1, 1, 128>}, {transform_indices = @transform_12, window_bounds = array<i64: 1, 1, 128>}, {transform_indices = @transform_13, window_bounds = array<i64: 1, 1, 128>}, {transform_indices = @transform_14, window_bounds = array<i64: 1, 128, 64>}, {transform_indices = @transform_15, window_bounds = array<i64: 1, 1, 64>}, {pipeline_mode = #tpu.pipeline_mode<synchronous>, transform_indices = @transform_16, window_bounds = array<i64: 64, 128>}, {pipeline_mode = #tpu.pipeline_mode<synchronous>, transform_indices = @transform_17, window_bounds = array<i64: 1, 128>}, {pipeline_mode = #tpu.pipeline_mode<synchronous>, transform_indices = @transform_18, window_bounds = array<i64: 128, 64>}, {transform_indices = @transform_19, window_bounds = array<i64: 1, 14, 64>}]} {
    %c0_i32 = arith.constant 0 : i32
    %0 = arith.cmpi eq, %arg1, %c0_i32 : i32
    %1 = arith.extui %0 : i1 to i32
    %c0_i32_0 = arith.constant 0 : i32
    %2 = arith.cmpi ne, %1, %c0_i32_0 : i32
    scf.if %2 {
      %c0_59 = arith.constant 0 : index
      %c0_60 = arith.constant 0 : index
      %c0_61 = arith.constant 0 : index
      %123 = vector.load %arg3[%c0_59, %c0_60, %c0_61] : memref<1x14x32xf32, #tpu.memory_space<vmem>>, vector<1x14x32xf32>
      %124 = vector.shape_cast %123 : vector<1x14x32xf32> to vector<14x32xf32>
      %c0_62 = arith.constant 0 : index
      %c0_63 = arith.constant 0 : index
      %125 = vector.load %arg4[%c0_62, %c0_63] : memref<32x64xf32, #tpu.memory_space<vmem>>, vector<32x64xf32>
      %cst_64 = arith.constant dense<0.000000e+00> : vector<14x64xf32>
      %126 = tpu.matmul %124, %125, %cst_64 {dimension_numbers = #tpu.dot_dimension_numbers<[1], [0], [0], [1], [0, 0, 1, 1], [], []>} : vector<14x32xf32>, vector<32x64xf32>, vector<14x64xf32> -> vector<14x64xf32>
      %c0_65 = arith.constant 0 : index
      %c0_66 = arith.constant 0 : index
      %127 = vector.load %arg23[%c0_65, %c0_66] : memref<14x64xf32, #tpu.memory_space<vmem>>, vector<14x64xf32>
      tpu.vector_store %arg23[%c0_65, %c0_66], %126 {strides = array<i32>} : memref<14x64xf32, #tpu.memory_space<vmem>>, vector<14x64xf32>,
      %c0_67 = arith.constant 0 : index
      %c0_68 = arith.constant 0 : index
      %128 = vector.load %arg5[%c0_67, %c0_68] : memref<1x64xf32, #tpu.memory_space<vmem>>, vector<1x64xf32>
      %c0_69 = arith.constant 0 : index
      %c0_70 = arith.constant 0 : index
      %129 = vector.load %arg6[%c0_69, %c0_70] : memref<1x64xf32, #tpu.memory_space<vmem>>, vector<1x64xf32>
      %130 = vector.shape_cast %126 : vector<14x64xf32> to vector<1x14x64xf32>
      %cst_71 = arith.constant dense<0.000000e+00> : vector<1xf32>
      %131 = vector.multi_reduction <add>, %130, %cst_71 [1, 2] : vector<1x14x64xf32> to vector<1xf32>
      %132 = vector.shape_cast %131 : vector<1xf32> to vector<1x1x1xf32>
      %133 = vector.extract %132[0, 0, 0] : f32 from vector<1x1x1xf32>
      %cst_72 = arith.constant 8.960000e+02 : f32
      %134 = arith.divf %133, %cst_72 : f32
      %135 = arith.mulf %126, %126 : vector<14x64xf32>
      %136 = vector.shape_cast %135 : vector<14x64xf32> to vector<1x14x64xf32>
      %cst_73 = arith.constant dense<0.000000e+00> : vector<1xf32>
      %137 = vector.multi_reduction <add>, %136, %cst_73 [1, 2] : vector<1x14x64xf32> to vector<1xf32>
      %138 = vector.shape_cast %137 : vector<1xf32> to vector<1x1x1xf32>
      %139 = vector.extract %138[0, 0, 0] : f32 from vector<1x1x1xf32>
      %cst_74 = arith.constant 8.960000e+02 : f32
      %140 = arith.divf %139, %cst_74 : f32
      %141 = arith.mulf %134, %134 : f32
      %142 = arith.subf %140, %141 : f32
      %cst_75 = arith.constant 0.000000e+00 : f32
      %143 = arith.maximumf %142, %cst_75 : f32
      %144 = vector.broadcast %134 : f32 to vector<14x64xf32>
      %145 = arith.subf %126, %144 : vector<14x64xf32>
      %cst_76 = arith.constant 9.99999993E-9 : f32
      %146 = arith.addf %143, %cst_76 : f32
      %147 = math.rsqrt %146 : f32
      %148 = vector.broadcast %147 : f32 to vector<14x64xf32>
      %149 = arith.mulf %145, %148 : vector<14x64xf32>
      %150 = vector.broadcast %128 : vector<1x64xf32> to vector<14x64xf32>
      %151 = arith.mulf %149, %150 : vector<14x64xf32>
      %152 = vector.broadcast %129 : vector<1x64xf32> to vector<14x64xf32>
      %153 = arith.addf %151, %152 : vector<14x64xf32>
      %c0_77 = arith.constant 0 : index
      %c0_78 = arith.constant 0 : index
      %154 = vector.load %arg7[%c0_77, %c0_78] : memref<64x64xf32, #tpu.memory_space<vmem>>, vector<64x64xf32>
      %cst_79 = arith.constant dense<0.000000e+00> : vector<14x64xf32>
      %155 = tpu.matmul %153, %154, %cst_79 {dimension_numbers = #tpu.dot_dimension_numbers<[1], [0], [0], [1], [0, 0, 1, 1], [], []>} : vector<14x64xf32>, vector<64x64xf32>, vector<14x64xf32> -> vector<14x64xf32>
      %c0_80 = arith.constant 0 : index
      %c0_81 = arith.constant 0 : index
      %156 = vector.load %arg8[%c0_80, %c0_81] : memref<1x64xf32, #tpu.memory_space<vmem>>, vector<1x64xf32>
      %157 = vector.broadcast %156 : vector<1x64xf32> to vector<14x64xf32>
      %158 = arith.addf %155, %157 : vector<14x64xf32>
      %c0_82 = arith.constant 0 : index
      %c0_83 = arith.constant 0 : index
      %159 = vector.load %arg24[%c0_82, %c0_83] : memref<14x64xf32, #tpu.memory_space<vmem>>, vector<14x64xf32>
      tpu.vector_store %arg24[%c0_82, %c0_83], %158 {strides = array<i32>} : memref<14x64xf32, #tpu.memory_space<vmem>>, vector<14x64xf32>,
      %cst_84 = arith.constant 0.000000e+00 : f32
      %160 = vector.broadcast %cst_84 : f32 to vector<8x128xf32>
      %c0_85 = arith.constant 0 : index
      %c0_86 = arith.constant 0 : index
      %161 = vector.load %arg25[%c0_85, %c0_86] : memref<24x128xf32, #tpu.memory_space<vmem>>, vector<8x128xf32>
      tpu.vector_store %arg25[%c0_85, %c0_86], %160 {strides = array<i32>} : memref<24x128xf32, #tpu.memory_space<vmem>>, vector<8x128xf32>,
      %cst_87 = arith.constant 0.000000e+00 : f32
      %162 = vector.broadcast %cst_87 : f32 to vector<2x128xf32>
      %c22 = arith.constant 22 : index
      %c0_88 = arith.constant 0 : index
      %163 = vector.load %arg25[%c22, %c0_88] : memref<24x128xf32, #tpu.memory_space<vmem>>, vector<2x128xf32>
      tpu.vector_store %arg25[%c22, %c0_88], %162 {strides = array<i32>} : memref<24x128xf32, #tpu.memory_space<vmem>>, vector<2x128xf32>,
    } else {
    }
    %3 = arith.index_cast %arg1 : i32 to index
    %4 = memref.load %arg2[%3] : memref<4xi32, #tpu.memory_space<smem>>
    %c1_i32 = arith.constant 1 : i32
    %5 = arith.muli %4, %c1_i32 : i32
    %c0 = arith.constant 0 : index
    %c0_1 = arith.constant 0 : index
    %6 = vector.load %arg24[%c0, %c0_1] : memref<14x64xf32, #tpu.memory_space<vmem>>, vector<14x64xf32>
    %c0_2 = arith.constant 0 : index
    %c0_3 = arith.constant 0 : index
    %c0_4 = arith.constant 0 : index
    %7 = vector.load %arg9[%c0_2, %c0_3, %c0_4] : memref<1x64x128xf32, #tpu.memory_space<vmem>>, vector<1x64x128xf32>
    %8 = vector.shape_cast %7 : vector<1x64x128xf32> to vector<64x128xf32>
    %cst = arith.constant dense<0.000000e+00> : vector<14x128xf32>
    %9 = tpu.matmul %6, %8, %cst {dimension_numbers = #tpu.dot_dimension_numbers<[1], [0], [0], [1], [0, 0, 1, 1], [], []>} : vector<14x64xf32>, vector<64x128xf32>, vector<14x128xf32> -> vector<14x128xf32>
    %c0_5 = arith.constant 0 : index
    %c0_6 = arith.constant 0 : index
    %c0_7 = arith.constant 0 : index
    %10 = vector.load %arg10[%c0_5, %c0_6, %c0_7] : memref<1x1x128xf32, #tpu.memory_space<vmem>>, vector<1x1x128xf32>
    %11 = vector.shape_cast %10 : vector<1x1x128xf32> to vector<1x128xf32>
    %12 = vector.broadcast %11 : vector<1x128xf32> to vector<14x128xf32>
    %13 = arith.addf %9, %12 : vector<14x128xf32>
    %cst_8 = arith.constant 0.000000e+00 : f32
    %14 = vector.broadcast %cst_8 : f32 to vector<14x128xf32>
    %15 = arith.cmpf oge, %13, %14 : vector<14x128xf32>
    %cst_9 = arith.constant 2.500000e-01 : f32
    %16 = vector.broadcast %cst_9 : f32 to vector<14x128xf32>
    %17 = arith.mulf %16, %13 : vector<14x128xf32>
    %18 = arith.select %15, %13, %17 : vector<14x128xi1>, vector<14x128xf32>
    %c0_10 = arith.constant 0 : index
    %c0_11 = arith.constant 0 : index
    %c0_12 = arith.constant 0 : index
    %19 = vector.load %arg11[%c0_10, %c0_11, %c0_12] : memref<1x1x128xf32, #tpu.memory_space<vmem>>, vector<1x1x128xf32>
    %20 = vector.shape_cast %19 : vector<1x1x128xf32> to vector<1x128xf32>
    %c0_13 = arith.constant 0 : index
    %c0_14 = arith.constant 0 : index
    %c0_15 = arith.constant 0 : index
    %21 = vector.load %arg12[%c0_13, %c0_14, %c0_15] : memref<1x1x128xf32, #tpu.memory_space<vmem>>, vector<1x1x128xf32>
    %22 = vector.shape_cast %21 : vector<1x1x128xf32> to vector<1x128xf32>
    %23 = vector.shape_cast %18 : vector<14x128xf32> to vector<1x14x128xf32>
    %cst_16 = arith.constant dense<0.000000e+00> : vector<1xf32>
    %24 = vector.multi_reduction <add>, %23, %cst_16 [1, 2] : vector<1x14x128xf32> to vector<1xf32>
    %25 = vector.shape_cast %24 : vector<1xf32> to vector<1x1x1xf32>
    %26 = vector.extract %25[0, 0, 0] : f32 from vector<1x1x1xf32>
    %cst_17 = arith.constant 1.792000e+03 : f32
    %27 = arith.divf %26, %cst_17 : f32
    %28 = arith.mulf %18, %18 : vector<14x128xf32>
    %29 = vector.shape_cast %28 : vector<14x128xf32> to vector<1x14x128xf32>
    %cst_18 = arith.constant dense<0.000000e+00> : vector<1xf32>
    %30 = vector.multi_reduction <add>, %29, %cst_18 [1, 2] : vector<1x14x128xf32> to vector<1xf32>
    %31 = vector.shape_cast %30 : vector<1xf32> to vector<1x1x1xf32>
    %32 = vector.extract %31[0, 0, 0] : f32 from vector<1x1x1xf32>
    %cst_19 = arith.constant 1.792000e+03 : f32
    %33 = arith.divf %32, %cst_19 : f32
    %34 = arith.mulf %27, %27 : f32
    %35 = arith.subf %33, %34 : f32
    %cst_20 = arith.constant 0.000000e+00 : f32
    %36 = arith.maximumf %35, %cst_20 : f32
    %37 = vector.broadcast %27 : f32 to vector<14x128xf32>
    %38 = arith.subf %18, %37 : vector<14x128xf32>
    %cst_21 = arith.constant 9.99999993E-9 : f32
    %39 = arith.addf %36, %cst_21 : f32
    %40 = math.rsqrt %39 : f32
    %41 = vector.broadcast %40 : f32 to vector<14x128xf32>
    %42 = arith.mulf %38, %41 : vector<14x128xf32>
    %43 = vector.broadcast %20 : vector<1x128xf32> to vector<14x128xf32>
    %44 = arith.mulf %42, %43 : vector<14x128xf32>
    %45 = vector.broadcast %22 : vector<1x128xf32> to vector<14x128xf32>
    %46 = arith.addf %44, %45 : vector<14x128xf32>
    %c8 = arith.constant 8 : index
    %c0_22 = arith.constant 0 : index
    %47 = vector.load %arg25[%c8, %c0_22] : memref<24x128xf32, #tpu.memory_space<vmem>>, vector<14x128xf32>
    tpu.vector_store %arg25[%c8, %c0_22], %46 {strides = array<i32>} : memref<24x128xf32, #tpu.memory_space<vmem>>, vector<14x128xf32>,
    %c0_23 = arith.constant 0 : index
    %c0_24 = arith.constant 0 : index
    %c0_25 = arith.constant 0 : index
    %48 = vector.load %arg13[%c0_23, %c0_24, %c0_25] : memref<1x3x128xf32, #tpu.memory_space<vmem>>, vector<1x3x128xf32>
    %49 = vector.shape_cast %48 : vector<1x3x128xf32> to vector<3x128xf32>
    %c8_i32 = arith.constant 8 : i32
    %50 = arith.subi %c8_i32, %5 : i32
    %51 = arith.index_cast %50 : i32 to index
    %c0_26 = arith.constant 0 : index
    %52 = vector.load %arg25[%51, %c0_26] : memref<24x128xf32, #tpu.memory_space<vmem>>, vector<14x128xf32>
    %53 = vector.extract_strided_slice %49 {offsets = [0, 0], sizes = [1, 128], strides = [1, 1]} : vector<3x128xf32> to vector<1x128xf32>
    %54 = vector.broadcast %53 : vector<1x128xf32> to vector<14x128xf32>
    %55 = arith.mulf %52, %54 : vector<14x128xf32>
    %c8_i32_27 = arith.constant 8 : i32
    %56 = arith.subi %c8_i32_27, %5 : i32
    %c1_i32_28 = arith.constant 1 : i32
    %57 = arith.muli %c1_i32_28, %4 : i32
    %58 = arith.addi %56, %57 : i32
    %59 = arith.index_cast %58 : i32 to index
    %c0_29 = arith.constant 0 : index
    %60 = vector.load %arg25[%59, %c0_29] : memref<24x128xf32, #tpu.memory_space<vmem>>, vector<14x128xf32>
    %61 = vector.extract_strided_slice %49 {offsets = [1, 0], sizes = [1, 128], strides = [1, 1]} : vector<3x128xf32> to vector<1x128xf32>
    %62 = vector.broadcast %61 : vector<1x128xf32> to vector<14x128xf32>
    %63 = arith.mulf %60, %62 : vector<14x128xf32>
    %64 = arith.addf %55, %63 : vector<14x128xf32>
    %c8_i32_30 = arith.constant 8 : i32
    %65 = arith.subi %c8_i32_30, %5 : i32
    %c2_i32 = arith.constant 2 : i32
    %66 = arith.muli %c2_i32, %4 : i32
    %67 = arith.addi %65, %66 : i32
    %68 = arith.index_cast %67 : i32 to index
    %c0_31 = arith.constant 0 : index
    %69 = vector.load %arg25[%68, %c0_31] : memref<24x128xf32, #tpu.memory_space<vmem>>, vector<14x128xf32>
    %70 = vector.extract_strided_slice %49 {offsets = [2, 0], sizes = [1, 128], strides = [1, 1]} : vector<3x128xf32> to vector<1x128xf32>
    %71 = vector.broadcast %70 : vector<1x128xf32> to vector<14x128xf32>
    %72 = arith.mulf %69, %71 : vector<14x128xf32>
    %73 = arith.addf %64, %72 : vector<14x128xf32>
    %c0_32 = arith.constant 0 : index
    %c0_33 = arith.constant 0 : index
    %c0_34 = arith.constant 0 : index
    %74 = vector.load %arg14[%c0_32, %c0_33, %c0_34] : memref<1x1x128xf32, #tpu.memory_space<vmem>>, vector<1x1x128xf32>
    %75 = vector.shape_cast %74 : vector<1x1x128xf32> to vector<1x128xf32>
    %76 = vector.broadcast %75 : vector<1x128xf32> to vector<14x128xf32>
    %77 = arith.addf %73, %76 : vector<14x128xf32>
    %cst_35 = arith.constant 0.000000e+00 : f32
    %78 = vector.broadcast %cst_35 : f32 to vector<14x128xf32>
    %79 = arith.cmpf oge, %77, %78 : vector<14x128xf32>
    %cst_36 = arith.constant 2.500000e-01 : f32
    %80 = vector.broadcast %cst_36 : f32 to vector<14x128xf32>
    %81 = arith.mulf %80, %77 : vector<14x128xf32>
    %82 = arith.select %79, %77, %81 : vector<14x128xi1>, vector<14x128xf32>
    %c0_37 = arith.constant 0 : index
    %c0_38 = arith.constant 0 : index
    %c0_39 = arith.constant 0 : index
    %83 = vector.load %arg15[%c0_37, %c0_38, %c0_39] : memref<1x1x128xf32, #tpu.memory_space<vmem>>, vector<1x1x128xf32>
    %84 = vector.shape_cast %83 : vector<1x1x128xf32> to vector<1x128xf32>
    %c0_40 = arith.constant 0 : index
    %c0_41 = arith.constant 0 : index
    %c0_42 = arith.constant 0 : index
    %85 = vector.load %arg16[%c0_40, %c0_41, %c0_42] : memref<1x1x128xf32, #tpu.memory_space<vmem>>, vector<1x1x128xf32>
    %86 = vector.shape_cast %85 : vector<1x1x128xf32> to vector<1x128xf32>
    %87 = vector.shape_cast %82 : vector<14x128xf32> to vector<1x14x128xf32>
    %cst_43 = arith.constant dense<0.000000e+00> : vector<1xf32>
    %88 = vector.multi_reduction <add>, %87, %cst_43 [1, 2] : vector<1x14x128xf32> to vector<1xf32>
    %89 = vector.shape_cast %88 : vector<1xf32> to vector<1x1x1xf32>
    %90 = vector.extract %89[0, 0, 0] : f32 from vector<1x1x1xf32>
    %cst_44 = arith.constant 1.792000e+03 : f32
    %91 = arith.divf %90, %cst_44 : f32
    %92 = arith.mulf %82, %82 : vector<14x128xf32>
    %93 = vector.shape_cast %92 : vector<14x128xf32> to vector<1x14x128xf32>
    %cst_45 = arith.constant dense<0.000000e+00> : vector<1xf32>
    %94 = vector.multi_reduction <add>, %93, %cst_45 [1, 2] : vector<1x14x128xf32> to vector<1xf32>
    %95 = vector.shape_cast %94 : vector<1xf32> to vector<1x1x1xf32>
    %96 = vector.extract %95[0, 0, 0] : f32 from vector<1x1x1xf32>
    %cst_46 = arith.constant 1.792000e+03 : f32
    %97 = arith.divf %96, %cst_46 : f32
    %98 = arith.mulf %91, %91 : f32
    %99 = arith.subf %97, %98 : f32
    %cst_47 = arith.constant 0.000000e+00 : f32
    %100 = arith.maximumf %99, %cst_47 : f32
    %101 = vector.broadcast %91 : f32 to vector<14x128xf32>
    %102 = arith.subf %82, %101 : vector<14x128xf32>
    %cst_48 = arith.constant 9.99999993E-9 : f32
    %103 = arith.addf %100, %cst_48 : f32
    %104 = math.rsqrt %103 : f32
    %105 = vector.broadcast %104 : f32 to vector<14x128xf32>
    %106 = arith.mulf %102, %105 : vector<14x128xf32>
    %107 = vector.broadcast %84 : vector<1x128xf32> to vector<14x128xf32>
    %108 = arith.mulf %106, %107 : vector<14x128xf32>
    %109 = vector.broadcast %86 : vector<1x128xf32> to vector<14x128xf32>
    %110 = arith.addf %108, %109 : vector<14x128xf32>
    %c0_49 = arith.constant 0 : index
    %c0_50 = arith.constant 0 : index
    %c0_51 = arith.constant 0 : index
    %111 = vector.load %arg17[%c0_49, %c0_50, %c0_51] : memref<1x128x64xf32, #tpu.memory_space<vmem>>, vector<1x128x64xf32>
    %112 = vector.shape_cast %111 : vector<1x128x64xf32> to vector<128x64xf32>
    %cst_52 = arith.constant dense<0.000000e+00> : vector<14x64xf32>
    %113 = tpu.matmul %110, %112, %cst_52 {dimension_numbers = #tpu.dot_dimension_numbers<[1], [0], [0], [1], [0, 0, 1, 1], [], []>} : vector<14x128xf32>, vector<128x64xf32>, vector<14x64xf32> -> vector<14x64xf32>
    %c0_53 = arith.constant 0 : index
    %c0_54 = arith.constant 0 : index
    %c0_55 = arith.constant 0 : index
    %114 = vector.load %arg18[%c0_53, %c0_54, %c0_55] : memref<1x1x64xf32, #tpu.memory_space<vmem>>, vector<1x1x64xf32>
    %115 = vector.shape_cast %114 : vector<1x1x64xf32> to vector<1x64xf32>
    %116 = vector.broadcast %115 : vector<1x64xf32> to vector<14x64xf32>
    %117 = arith.addf %113, %116 : vector<14x64xf32>
    %118 = arith.addf %6, %117 : vector<14x64xf32>
    %c0_56 = arith.constant 0 : index
    %c0_57 = arith.constant 0 : index
    %119 = vector.load %arg24[%c0_56, %c0_57] : memref<14x64xf32, #tpu.memory_space<vmem>>, vector<14x64xf32>
    tpu.vector_store %arg24[%c0_56, %c0_57], %118 {strides = array<i32>} : memref<14x64xf32, #tpu.memory_space<vmem>>, vector<14x64xf32>,
    %c3_i32 = arith.constant 3 : i32
    %120 = arith.cmpi eq, %arg1, %c3_i32 : i32
    %121 = arith.extui %120 : i1 to i32
    %c0_i32_58 = arith.constant 0 : i32
    %122 = arith.cmpi ne, %121, %c0_i32_58 : i32
    scf.if %122 {
      %c0_59 = arith.constant 0 : index
      %c0_60 = arith.constant 0 : index
      %123 = vector.load %arg24[%c0_59, %c0_60] : memref<14x64xf32, #tpu.memory_space<vmem>>, vector<14x64xf32>
      %cst_61 = arith.constant 0.000000e+00 : f32
      %124 = vector.broadcast %cst_61 : f32 to vector<14x64xf32>
      %125 = arith.cmpf oge, %123, %124 : vector<14x64xf32>
      %cst_62 = arith.constant 2.500000e-01 : f32
      %126 = vector.broadcast %cst_62 : f32 to vector<14x64xf32>
      %127 = arith.mulf %126, %123 : vector<14x64xf32>
      %128 = arith.select %125, %123, %127 : vector<14x64xi1>, vector<14x64xf32>
      %c0_63 = arith.constant 0 : index
      %c0_64 = arith.constant 0 : index
      %129 = vector.load %arg19[%c0_63, %c0_64] : memref<64x128xf32, #tpu.memory_space<vmem>>, vector<64x128xf32>
      %cst_65 = arith.constant dense<0.000000e+00> : vector<14x128xf32>
      %130 = tpu.matmul %128, %129, %cst_65 {dimension_numbers = #tpu.dot_dimension_numbers<[1], [0], [0], [1], [0, 0, 1, 1], [], []>} : vector<14x64xf32>, vector<64x128xf32>, vector<14x128xf32> -> vector<14x128xf32>
      %c0_66 = arith.constant 0 : index
      %c0_67 = arith.constant 0 : index
      %131 = vector.load %arg20[%c0_66, %c0_67] : memref<1x128xf32, #tpu.memory_space<vmem>>, vector<1x128xf32>
      %132 = vector.broadcast %131 : vector<1x128xf32> to vector<14x128xf32>
      %133 = arith.addf %130, %132 : vector<14x128xf32>
      %c0_68 = arith.constant 0 : index
      %c0_69 = arith.constant 0 : index
      %134 = vector.load %arg23[%c0_68, %c0_69] : memref<14x64xf32, #tpu.memory_space<vmem>>, vector<14x64xf32>
      %135 = tpu.concatenate %134, %134 in 1 : vector<14x64xf32>, vector<14x64xf32> -> vector<14x128xf32>
      %136 = arith.negf %133 : vector<14x128xf32>
      %137 = math.exp %136 : vector<14x128xf32>
      %cst_70 = arith.constant 1.000000e+00 : f32
      %138 = vector.broadcast %cst_70 : f32 to vector<14x128xf32>
      %139 = arith.addf %138, %137 : vector<14x128xf32>
      %140 = arith.divf %138, %139 : vector<14x128xf32>
      %141 = arith.mulf %135, %140 : vector<14x128xf32>
      %c0_71 = arith.constant 0 : index
      %c0_72 = arith.constant 0 : index
      %142 = vector.load %arg21[%c0_71, %c0_72] : memref<128x64xf32, #tpu.memory_space<vmem>>, vector<128x64xf32>
      %cst_73 = arith.constant dense<0.000000e+00> : vector<14x64xf32>
      %143 = tpu.matmul %141, %142, %cst_73 {dimension_numbers = #tpu.dot_dimension_numbers<[1], [0], [0], [1], [0, 0, 1, 1], [], []>} : vector<14x128xf32>, vector<128x64xf32>, vector<14x64xf32> -> vector<14x64xf32>
      %c0_74 = arith.constant 0 : index
      %c0_75 = arith.constant 0 : index
      %c0_76 = arith.constant 0 : index
      %144 = vector.load %arg22[%c0_74, %c0_75, %c0_76] : memref<1x14x64xf32, #tpu.memory_space<vmem>>, vector<1x14x64xf32>
      %145 = vector.shape_cast %144 : vector<1x14x64xf32> to vector<14x64xf32>
      %146 = vector.shape_cast %143 : vector<14x64xf32> to vector<1x14x64xf32>
      tpu.vector_store %arg22[%c0_74, %c0_75, %c0_76], %146 {strides = array<i32>} : memref<1x14x64xf32, #tpu.memory_space<vmem>>, vector<1x14x64xf32>,
    } else {
    }
    return
  }
  func.func @transform_0(%arg0: i32, %arg1: i32, %arg2: memref<4xi32, #tpu.memory_space<smem>>) -> (i32, i32, i32) {
    %c0_i32 = arith.constant 0 : i32
    %c0_i32_0 = arith.constant 0 : i32
    %c0_i32_1 = arith.constant 0 : i32
    return %arg0, %c0_i32, %c0_i32_0 : i32, i32, i32
  }
  func.func @transform_1(%arg0: i32, %arg1: i32, %arg2: memref<4xi32, #tpu.memory_space<smem>>) -> (i32, i32) {
    %c0_i32 = arith.constant 0 : i32
    %c0_i32_0 = arith.constant 0 : i32
    %c0_i32_1 = arith.constant 0 : i32
    return %c0_i32, %c0_i32_0 : i32, i32
  }
  func.func @transform_2(%arg0: i32, %arg1: i32, %arg2: memref<4xi32, #tpu.memory_space<smem>>) -> (i32, i32) {
    %c0_i32 = arith.constant 0 : i32
    %c0_i32_0 = arith.constant 0 : i32
    %c0_i32_1 = arith.constant 0 : i32
    return %c0_i32, %c0_i32_0 : i32, i32
  }
  func.func @transform_3(%arg0: i32, %arg1: i32, %arg2: memref<4xi32, #tpu.memory_space<smem>>) -> (i32, i32) {
    %c0_i32 = arith.constant 0 : i32
    %c0_i32_0 = arith.constant 0 : i32
    %c0_i32_1 = arith.constant 0 : i32
    return %c0_i32, %c0_i32_0 : i32, i32
  }
  func.func @transform_4(%arg0: i32, %arg1: i32, %arg2: memref<4xi32, #tpu.memory_space<smem>>) -> (i32, i32) {
    %c0_i32 = arith.constant 0 : i32
    %c0_i32_0 = arith.constant 0 : i32
    %c0_i32_1 = arith.constant 0 : i32
    return %c0_i32, %c0_i32_0 : i32, i32
  }
  func.func @transform_5(%arg0: i32, %arg1: i32, %arg2: memref<4xi32, #tpu.memory_space<smem>>) -> (i32, i32) {
    %c0_i32 = arith.constant 0 : i32
    %c0_i32_0 = arith.constant 0 : i32
    %c0_i32_1 = arith.constant 0 : i32
    return %c0_i32, %c0_i32_0 : i32, i32
  }
  func.func @transform_6(%arg0: i32, %arg1: i32, %arg2: memref<4xi32, #tpu.memory_space<smem>>) -> (i32, i32, i32) {
    %c0_i32 = arith.constant 0 : i32
    %c0_i32_0 = arith.constant 0 : i32
    %c0_i32_1 = arith.constant 0 : i32
    return %arg1, %c0_i32, %c0_i32_0 : i32, i32, i32
  }
  func.func @transform_7(%arg0: i32, %arg1: i32, %arg2: memref<4xi32, #tpu.memory_space<smem>>) -> (i32, i32, i32) {
    %c0_i32 = arith.constant 0 : i32
    %c0_i32_0 = arith.constant 0 : i32
    %c0_i32_1 = arith.constant 0 : i32
    return %arg1, %c0_i32, %c0_i32_0 : i32, i32, i32
  }
  func.func @transform_8(%arg0: i32, %arg1: i32, %arg2: memref<4xi32, #tpu.memory_space<smem>>) -> (i32, i32, i32) {
    %c0_i32 = arith.constant 0 : i32
    %c0_i32_0 = arith.constant 0 : i32
    %c0_i32_1 = arith.constant 0 : i32
    return %arg1, %c0_i32, %c0_i32_0 : i32, i32, i32
  }
  func.func @transform_9(%arg0: i32, %arg1: i32, %arg2: memref<4xi32, #tpu.memory_space<smem>>) -> (i32, i32, i32) {
    %c0_i32 = arith.constant 0 : i32
    %c0_i32_0 = arith.constant 0 : i32
    %c0_i32_1 = arith.constant 0 : i32
    return %arg1, %c0_i32, %c0_i32_0 : i32, i32, i32
  }
  func.func @transform_10(%arg0: i32, %arg1: i32, %arg2: memref<4xi32, #tpu.memory_space<smem>>) -> (i32, i32, i32) {
    %c0_i32 = arith.constant 0 : i32
    %c0_i32_0 = arith.constant 0 : i32
    %c0_i32_1 = arith.constant 0 : i32
    return %arg1, %c0_i32, %c0_i32_0 : i32, i32, i32
  }
  func.func @transform_11(%arg0: i32, %arg1: i32, %arg2: memref<4xi32, #tpu.memory_space<smem>>) -> (i32, i32, i32) {
    %c0_i32 = arith.constant 0 : i32
    %c0_i32_0 = arith.constant 0 : i32
    %c0_i32_1 = arith.constant 0 : i32
    return %arg1, %c0_i32, %c0_i32_0 : i32, i32, i32
  }
  func.func @transform_12(%arg0: i32, %arg1: i32, %arg2: memref<4xi32, #tpu.memory_space<smem>>) -> (i32, i32, i32) {
    %c0_i32 = arith.constant 0 : i32
    %c0_i32_0 = arith.constant 0 : i32
    %c0_i32_1 = arith.constant 0 : i32
    return %arg1, %c0_i32, %c0_i32_0 : i32, i32, i32
  }
  func.func @transform_13(%arg0: i32, %arg1: i32, %arg2: memref<4xi32, #tpu.memory_space<smem>>) -> (i32, i32, i32) {
    %c0_i32 = arith.constant 0 : i32
    %c0_i32_0 = arith.constant 0 : i32
    %c0_i32_1 = arith.constant 0 : i32
    return %arg1, %c0_i32, %c0_i32_0 : i32, i32, i32
  }
  func.func @transform_14(%arg0: i32, %arg1: i32, %arg2: memref<4xi32, #tpu.memory_space<smem>>) -> (i32, i32, i32) {
    %c0_i32 = arith.constant 0 : i32
    %c0_i32_0 = arith.constant 0 : i32
    %c0_i32_1 = arith.constant 0 : i32
    return %arg1, %c0_i32, %c0_i32_0 : i32, i32, i32
  }
  func.func @transform_15(%arg0: i32, %arg1: i32, %arg2: memref<4xi32, #tpu.memory_space<smem>>) -> (i32, i32, i32) {
    %c0_i32 = arith.constant 0 : i32
    %c0_i32_0 = arith.constant 0 : i32
    %c0_i32_1 = arith.constant 0 : i32
    return %arg1, %c0_i32, %c0_i32_0 : i32, i32, i32
  }
  func.func @transform_16(%arg0: i32, %arg1: i32, %arg2: memref<4xi32, #tpu.memory_space<smem>>) -> (i32, i32) {
    %c0_i32 = arith.constant 0 : i32
    %c0_i32_0 = arith.constant 0 : i32
    %c0_i32_1 = arith.constant 0 : i32
    return %c0_i32, %c0_i32_0 : i32, i32
  }
  func.func @transform_17(%arg0: i32, %arg1: i32, %arg2: memref<4xi32, #tpu.memory_space<smem>>) -> (i32, i32) {
    %c0_i32 = arith.constant 0 : i32
    %c0_i32_0 = arith.constant 0 : i32
    %c0_i32_1 = arith.constant 0 : i32
    return %c0_i32, %c0_i32_0 : i32, i32
  }
  func.func @transform_18(%arg0: i32, %arg1: i32, %arg2: memref<4xi32, #tpu.memory_space<smem>>) -> (i32, i32) {
    %c0_i32 = arith.constant 0 : i32
    %c0_i32_0 = arith.constant 0 : i32
    %c0_i32_1 = arith.constant 0 : i32
    return %c0_i32, %c0_i32_0 : i32, i32
  }
  func.func @transform_19(%arg0: i32, %arg1: i32, %arg2: memref<4xi32, #tpu.memory_space<smem>>) -> (i32, i32, i32) {
    %c0_i32 = arith.constant 0 : i32
    %c0_i32_0 = arith.constant 0 : i32
    %c0_i32_1 = arith.constant 0 : i32
    return %arg0, %c0_i32, %c0_i32_0 : i32, i32, i32
  }
}

</mosaic_0001>

<llo_original>
// kernel: forward.1
$region0: #{forward.1}
  #allocation0 [shape = 'u32[]', space=smem, size = 0x4, offset = 0x4, fixed_abs, tag = 'smem constant byte address 0x4 - core index']
  #allocation1 [shape = 'u32[144,128]{1,0:T(1,128)}', space=vmem, size = 0x12000, scoped, tag = 'internal scratch']
  #allocation2 [shape = 'f32[14,64]{1,0:T(8,128)}', space=vmem, size = 0x2000, scoped, tag = 'scratch operand']
  #allocation3 [shape = 'f32[14,64]{1,0:T(8,128)}', space=vmem, size = 0x2000, scoped, tag = 'scratch operand']
  #allocation4 [shape = 'f32[24,128]{1,0:T(8,128)}', space=vmem, size = 0x3000, scoped, tag = 'scratch operand']
  #allocation5 [shape = 's32[1]{0}', space=sflag, size = 0x4, scoped, tag = 'scoped memory for forward.1']
  #allocation6 [shape = 'u8[512]{0}', space=smem, size = 0x200, scoped, tag = 'prefetched SMEM operand 0']
  %s0 = inlined_call_operand.hbm [shape: s32[4], index: 0, kind: input, shape index: {}]
  %s1 = inlined_call_operand.hbm [shape: f32[2,14,32], index: 1, kind: input, shape index: {}]
  %s2 = inlined_call_operand.hbm [shape: f32[32,64], index: 2, kind: input, shape index: {}]
  %s3 = inlined_call_operand.hbm [shape: f32[1,64], index: 3, kind: input, shape index: {}]
  %s4 = inlined_call_operand.hbm [shape: f32[1,64], index: 4, kind: input, shape index: {}]
  %s5 = inlined_call_operand.hbm [shape: f32[64,64], index: 5, kind: input, shape index: {}]
  %s6 = inlined_call_operand.hbm [shape: f32[1,64], index: 6, kind: input, shape index: {}]
  %s7 = inlined_call_operand.hbm [shape: f32[4,64,128], index: 7, kind: input, shape index: {}]
  %s8 = inlined_call_operand.hbm [shape: f32[4,1,128], index: 8, kind: input, shape index: {}]
  %s9 = inlined_call_operand.hbm [shape: f32[4,1,128], index: 9, kind: input, shape index: {}]
  %s10 = inlined_call_operand.hbm [shape: f32[4,1,128], index: 10, kind: input, shape index: {}]
  %s11 = inlined_call_operand.hbm [shape: f32[4,3,128], index: 11, kind: input, shape index: {}]
  %s12 = inlined_call_operand.hbm [shape: f32[4,1,128], index: 12, kind: input, shape index: {}]
  %s13 = inlined_call_operand.hbm [shape: f32[4,1,128], index: 13, kind: input, shape index: {}]
  %s14 = inlined_call_operand.hbm [shape: f32[4,1,128], index: 14, kind: input, shape index: {}]
  %s15 = inlined_call_operand.hbm [shape: f32[4,128,64], index: 15, kind: input, shape index: {}]
  %s16 = inlined_call_operand.hbm [shape: f32[4,1,64], index: 16, kind: input, shape index: {}]
  %s17 = inlined_call_operand.hbm [shape: f32[64,128], index: 17, kind: input, shape index: {}]
  %s18 = inlined_call_operand.hbm [shape: f32[1,128], index: 18, kind: input, shape index: {}]
  %s19 = inlined_call_operand.hbm [shape: f32[128,64], index: 19, kind: input, shape index: {}]
  %s20 = inlined_call_operand.hbm [shape: f32[2,14,64], index: 20, kind: output, shape index: {}]
  %s21 = sld [smem:[#allocation0]]
  $region193: #{forward.1} parent=0
    _
  %s23 = ssub.s32 1, %s21
  %s24 = scalar_select 0, %s23, %s21
  %26 = dma.hbm_to_smem %s0, 16, [#allocation6], [#allocation5]
  %27 = dma.done [#allocation5], 16
  %28 = sfence
  $region1: #{forward.1} parent=0
    #allocation7 [shape = 'u8[16384]{0}', space=vmem, size = 0x4000, scoped, tag = 'input window, operand 1']
    #allocation8 [shape = 's32[2]{0}', space=sflag, size = 0x8, scoped, tag = 'scoped memory for forward.1']
    #allocation9 [shape = 's32[2]{0}', space=sflag, size = 0x8, scoped, tag = 'scoped memory for forward.1']
    #allocation10 [shape = 'u8[16384]{0}', space=vmem, size = 0x4000, scoped, tag = 'input window, operand 2, single buffered']
    #allocation11 [shape = 's32[1]{0}', space=sflag, size = 0x4, scoped, tag = 'scoped memory for forward.1']
    #allocation12 [shape = 'u8[512]{0}', space=vmem, size = 0x400, scoped, tag = 'input window, operand 3, single buffered']
    #allocation13 [shape = 'u8[512]{0}', space=vmem, size = 0x400, scoped, tag = 'input window, operand 4, single buffered']
    #allocation14 [shape = 's32[1]{0}', space=sflag, size = 0x4, scoped, tag = 'scoped memory for forward.1']
    #allocation15 [shape = 'u8[32768]{0}', space=vmem, size = 0x8000, scoped, tag = 'input window, operand 5, single buffered']
    #allocation16 [shape = 'u8[512]{0}', space=vmem, size = 0x400, scoped, tag = 'input window, operand 6, single buffered']
    #allocation17 [shape = 's32[1]{0}', space=sflag, size = 0x4, scoped, tag = 'scoped memory for forward.1']
    #allocation18 [shape = 'u8[65536]{0}', space=vmem, size = 0x10000, scoped, tag = 'input window, operand 7']
    #allocation19 [shape = 'u8[1024]{0}', space=vmem, size = 0x400, scoped, tag = 'input window, operand 8']
    #allocation20 [shape = 'u8[1024]{0}', space=vmem, size = 0x400, scoped, tag = 'input window, operand 9']
    #allocation21 [shape = 'u8[1024]{0}', space=vmem, size = 0x400, scoped, tag = 'input window, operand 10']
    #allocation22 [shape = 'u8[4096]{0}', space=vmem, size = 0x1000, scoped, tag = 'input window, operand 11']
    #allocation23 [shape = 'u8[1024]{0}', space=vmem, size = 0x400, scoped, tag = 'input window, operand 12']
    #allocation24 [shape = 'u8[1024]{0}', space=vmem, size = 0x400, scoped, tag = 'input window, operand 13']
    #allocation25 [shape = 'u8[1024]{0}', space=vmem, size = 0x400, scoped, tag = 'input window, operand 14']
    #allocation26 [shape = 'u8[131072]{0}', space=vmem, size = 0x20000, scoped, tag = 'input window, operand 15']
    #allocation27 [shape = 'u8[1024]{0}', space=vmem, size = 0x400, scoped, tag = 'input window, operand 16']
    #allocation28 [shape = 'u8[32768]{0}', space=vmem, size = 0x8000, scoped, tag = 'input window, operand 17, single buffered']
    #allocation29 [shape = 'u8[512]{0}', space=vmem, size = 0x400, scoped, tag = 'input window, operand 18, single buffered']
    #allocation30 [shape = 'u8[65536]{0}', space=vmem, size = 0x10000, scoped, tag = 'input window, operand 19, single buffered']
    #allocation31 [shape = 'u8[16384]{0}', space=vmem, size = 0x4000, scoped, tag = 'output window, operand 0']
    %29 = vsyncpa [#allocation8], 0
    %s30 = scalar_lea.sflag [#allocation8], 1
    %31 = vsyncpa %s30, 0
    %32 = vsyncpa [#allocation11], 0
    %33 = vsyncpa [#allocation14], 0
    %34 = vsyncpa [#allocation17], 0
    %35 = vsyncpa [#allocation9], 0
    %s36 = scalar_lea.sflag [#allocation9], 1
    %37 = vsyncpa %s36, 0
    loop: start=0, step=1, limit=10
    $region2: #{forward.1} parent=1 // loop_pre_header
      _
    $region3: #{forward.1} parent=1 // loop_header
      %s39 = sphi 0, %s43
      %p40 = scmp.ge.s32.totalorder %s39, 10
      %s46 = sphi 0, %s58
      %s47 = sphi 0, %s54
      %s48 = sphi 0, %s46
      %s49 = sphi 0, %s47
      %s50 = sphi 0, %s48
      %s51 = sphi 0, %s49
      %s61 = sphi 0, %s63
      %s64 = sphi 0, %s61
      %s65 = sphi 0, %s64
      %s81 = sphi 0, %s65
      %s85 = sphi 0, %s85
      %s87 = sphi 0, %s85
      %s88 = sphi 0, %s87
      %s102 = sphi 0, %s88
      %s106 = sphi 0, %s106
      %s108 = sphi 0, %s106
      %s109 = sphi 0, %s108
      %s123 = sphi 0, %s109
      %s127 = sphi 0, %s127
      %s129 = sphi 0, %s127
      %s130 = sphi 0, %s129
      %s144 = sphi 0, %s130
      %s148 = sphi 0, %s148
      %s150 = sphi 0, %s148
      %s151 = sphi 0, %s150
      %s165 = sphi 0, %s151
      %s169 = sphi 0, %s169
      %s171 = sphi 0, %s169
      %s172 = sphi 0, %s171
      %s186 = sphi 0, %s172
      %s192 = sphi 0, %s194
      %s195 = sphi 0, %s192
      %s196 = sphi 0, %s195
      %s212 = sphi 0, %s196
      %s218 = sphi 0, %s220
      %s221 = sphi 0, %s218
      %s222 = sphi 0, %s221
      %s238 = sphi 0, %s222
      %s244 = sphi 0, %s246
      %s247 = sphi 0, %s244
      %s248 = sphi 0, %s247
      %s264 = sphi 0, %s248
      %s270 = sphi 0, %s272
      %s273 = sphi 0, %s270
      %s274 = sphi 0, %s273
      %s290 = sphi 0, %s274
      %s296 = sphi 0, %s298
      %s299 = sphi 0, %s296
      %s300 = sphi 0, %s299
      %s316 = sphi 0, %s300
      %s322 = sphi 0, %s324
      %s325 = sphi 0, %s322
      %s326 = sphi 0, %s325
      %s342 = sphi 0, %s326
      %s348 = sphi 0, %s350
      %s351 = sphi 0, %s348
      %s352 = sphi 0, %s351
      %s368 = sphi 0, %s352
      %s374 = sphi 0, %s376
      %s377 = sphi 0, %s374
      %s378 = sphi 0, %s377
      %s394 = sphi 0, %s378
      %s400 = sphi 0, %s402
      %s403 = sphi 0, %s400
      %s404 = sphi 0, %s403
      %s420 = sphi 0, %s404
      %s426 = sphi 0, %s428
      %s429 = sphi 0, %s426
      %s430 = sphi 0, %s429
      %s446 = sphi 0, %s430
      %s450 = sphi 0, %s450
      %s452 = sphi 0, %s450
      %s453 = sphi 0, %s452
      %s467 = sphi 0, %s453
      %s471 = sphi 0, %s471
      %s473 = sphi 0, %s471
      %s474 = sphi 0, %s473
      %s488 = sphi 0, %s474
      %s492 = sphi 0, %s492
      %s494 = sphi 0, %s492
      %s495 = sphi 0, %s494
      %s509 = sphi 0, %s495
      %s515 = sphi 0, %s517
      %s518 = sphi 0, %s515
      %s519 = sphi 0, %s518
      %s535 = sphi 0, %s519
    $region4: #{forward.1} parent=1 // loop_header_branch
      %42 = sbr.rel (%p40) target = $region8
    $region5: #{forward.1} parent=1 // loop_body
      %s44 = ssub.s32 %s39, 1
      %s45 = ssub.s32 %s39, 2
      %s52 = sadd.s32 1, %s47
      %p53 = scmp.ge.s32.totalorder %s52, 4
      %s54 = scalar_select %p53, 0, %s52
      %s55 = sadd.s32 1, %s46
      %s56 = scalar_select %p53, %s55, %s46
      %p57 = scmp.ge.s32.totalorder %s56, 2
      %s58 = scalar_select %p57, 0, %s56
      %s59 = ssub.s32 %s46, %s58
      %p60 = scmp.eq.s32.totalorder %s59, 0
      %s62 = sadd.s32 %s61, 1
      %s63 = scalar_select %p60, %s61, %s62
      %p66 = pneg %p60
      %p67 = scmp.eq.s32.totalorder %s39, 7
      %p68 = por %p66, %p67
      %p69 = scmp.ne.s32.totalorder %s61, %s64
      %p70 = scmp.eq.s32.totalorder %s39, 0
      %p71 = por %p69, %p70
      %p72 = scmp.ne.s32.totalorder %s61, %s64
      %p73 = scmp.eq.s32.totalorder %s44, 7
      %p74 = por %p72, %p73
      %p75 = scmp.ne.s32.totalorder %s64, %s65
      %p76 = scmp.eq.s32.totalorder %s44, 0
      %p77 = por %p75, %p76
      %p78 = scmp.ne.s32.totalorder %s64, %s65
      %p79 = scmp.eq.s32.totalorder %s45, 7
      %p80 = por %p78, %p79
      %p82 = scmp.ne.s32.totalorder %s65, %s81
      %p83 = scmp.eq.s32.totalorder %s45, 0
      %p84 = por %p82, %p83
      %s86 = sadd.s32 %s85, 1
      %p89 = scmp.eq.s32.totalorder %s39, 7
      %p90 = scmp.ne.s32.totalorder %s85, %s87
      %p91 = scmp.eq.s32.totalorder %s39, 0
      %p92 = por %p90, %p91
      %p93 = scmp.ne.s32.totalorder %s85, %s87
      %p94 = scmp.eq.s32.totalorder %s44, 7
      %p95 = por %p93, %p94
      %p96 = scmp.ne.s32.totalorder %s87, %s88
      %p97 = scmp.eq.s32.totalorder %s44, 0
      %p98 = por %p96, %p97
      %p99 = scmp.ne.s32.totalorder %s87, %s88
      %p100 = scmp.eq.s32.totalorder %s45, 7
      %p101 = por %p99, %p100
      %p103 = scmp.ne.s32.totalorder %s88, %s102
      %p104 = scmp.eq.s32.totalorder %s45, 0
      %p105 = por %p103, %p104
      %s107 = sadd.s32 %s106, 1
      %p110 = scmp.eq.s32.totalorder %s39, 7
      %p111 = scmp.ne.s32.totalorder %s106, %s108
      %p112 = scmp.eq.s32.totalorder %s39, 0
      %p113 = por %p111, %p112
      %p114 = scmp.ne.s32.totalorder %s106, %s108
      %p115 = scmp.eq.s32.totalorder %s44, 7
      %p116 = por %p114, %p115
      %p117 = scmp.ne.s32.totalorder %s108, %s109
      %p118 = scmp.eq.s32.totalorder %s44, 0
      %p119 = por %p117, %p118
      %p120 = scmp.ne.s32.totalorder %s108, %s109
      %p121 = scmp.eq.s32.totalorder %s45, 7
      %p122 = por %p120, %p121
      %p124 = scmp.ne.s32.totalorder %s109, %s123
      %p125 = scmp.eq.s32.totalorder %s45, 0
      %p126 = por %p124, %p125
      %s128 = sadd.s32 %s127, 1
      %p131 = scmp.eq.s32.totalorder %s39, 7
      %p132 = scmp.ne.s32.totalorder %s127, %s129
      %p133 = scmp.eq.s32.totalorder %s39, 0
      %p134 = por %p132, %p133
      %p135 = scmp.ne.s32.totalorder %s127, %s129
      %p136 = scmp.eq.s32.totalorder %s44, 7
      %p137 = por %p135, %p136
      %p138 = scmp.ne.s32.totalorder %s129, %s130
      %p139 = scmp.eq.s32.totalorder %s44, 0
      %p140 = por %p138, %p139
      %p141 = scmp.ne.s32.totalorder %s129, %s130
      %p142 = scmp.eq.s32.totalorder %s45, 7
      %p143 = por %p141, %p142
      %p145 = scmp.ne.s32.totalorder %s130, %s144
      %p146 = scmp.eq.s32.totalorder %s45, 0
      %p147 = por %p145, %p146
      %s149 = sadd.s32 %s148, 1
      %p152 = scmp.eq.s32.totalorder %s39, 7
      %p153 = scmp.ne.s32.totalorder %s148, %s150
      %p154 = scmp.eq.s32.totalorder %s39, 0
      %p155 = por %p153, %p154
      %p156 = scmp.ne.s32.totalorder %s148, %s150
      %p157 = scmp.eq.s32.totalorder %s44, 7
      %p158 = por %p156, %p157
      %p159 = scmp.ne.s32.totalorder %s150, %s151
      %p160 = scmp.eq.s32.totalorder %s44, 0
      %p161 = por %p159, %p160
      %p162 = scmp.ne.s32.totalorder %s150, %s151
      %p163 = scmp.eq.s32.totalorder %s45, 7
      %p164 = por %p162, %p163
      %p166 = scmp.ne.s32.totalorder %s151, %s165
      %p167 = scmp.eq.s32.totalorder %s45, 0
      %p168 = por %p166, %p167
      %s170 = sadd.s32 %s169, 1
      %p173 = scmp.eq.s32.totalorder %s39, 7
      %p174 = scmp.ne.s32.totalorder %s169, %s171
      %p175 = scmp.eq.s32.totalorder %s39, 0
      %p176 = por %p174, %p175
      %p177 = scmp.ne.s32.totalorder %s169, %s171
      %p178 = scmp.eq.s32.totalorder %s44, 7
      %p179 = por %p177, %p178
      %p180 = scmp.ne.s32.totalorder %s171, %s172
      %p181 = scmp.eq.s32.totalorder %s44, 0
      %p182 = por %p180, %p181
      %p183 = scmp.ne.s32.totalorder %s171, %s172
      %p184 = scmp.eq.s32.totalorder %s45, 7
      %p185 = por %p183, %p184
      %p187 = scmp.ne.s32.totalorder %s172, %s186
      %p188 = scmp.eq.s32.totalorder %s45, 0
      %p189 = por %p187, %p188
      %s190 = ssub.s32 %s47, %s54
      %p191 = scmp.eq.s32.totalorder %s190, 0
      %s193 = sadd.s32 %s192, 1
      %s194 = scalar_select %p191, %s192, %s193
      %p197 = pneg %p191
      %p198 = scmp.eq.s32.totalorder %s39, 7
      %p199 = por %p197, %p198
      %p200 = scmp.ne.s32.totalorder %s192, %s195
      %p201 = scmp.eq.s32.totalorder %s39, 0
      %p202 = por %p200, %p201
      %p203 = scmp.ne.s32.totalorder %s192, %s195
      %p204 = scmp.eq.s32.totalorder %s44, 7
      %p205 = por %p203, %p204
      %p206 = scmp.ne.s32.totalorder %s195, %s196
      %p207 = scmp.eq.s32.totalorder %s44, 0
      %p208 = por %p206, %p207
      %p209 = scmp.ne.s32.totalorder %s195, %s196
      %p210 = scmp.eq.s32.totalorder %s45, 7
      %p211 = por %p209, %p210
      %p213 = scmp.ne.s32.totalorder %s196, %s212
      %p214 = scmp.eq.s32.totalorder %s45, 0
      %p215 = por %p213, %p214
      %s216 = ssub.s32 %s47, %s54
      %p217 = scmp.eq.s32.totalorder %s216, 0
      %s219 = sadd.s32 %s218, 1
      %s220 = scalar_select %p217, %s218, %s219
      %p223 = pneg %p217
      %p224 = scmp.eq.s32.totalorder %s39, 7
      %p225 = por %p223, %p224
      %p226 = scmp.ne.s32.totalorder %s218, %s221
      %p227 = scmp.eq.s32.totalorder %s39, 0
      %p228 = por %p226, %p227
      %p229 = scmp.ne.s32.totalorder %s218, %s221
      %p230 = scmp.eq.s32.totalorder %s44, 7
      %p231 = por %p229, %p230
      %p232 = scmp.ne.s32.totalorder %s221, %s222
      %p233 = scmp.eq.s32.totalorder %s44, 0
      %p234 = por %p232, %p233
      %p235 = scmp.ne.s32.totalorder %s221, %s222
      %p236 = scmp.eq.s32.totalorder %s45, 7
      %p237 = por %p235, %p236
      %p239 = scmp.ne.s32.totalorder %s222, %s238
      %p240 = scmp.eq.s32.totalorder %s45, 0
      %p241 = por %p239, %p240
      %s242 = ssub.s32 %s47, %s54
      %p243 = scmp.eq.s32.totalorder %s242, 0
      %s245 = sadd.s32 %s244, 1
      %s246 = scalar_select %p243, %s244, %s245
      %p249 = pneg %p243
      %p250 = scmp.eq.s32.totalorder %s39, 7
      %p251 = por %p249, %p250
      %p252 = scmp.ne.s32.totalorder %s244, %s247
      %p253 = scmp.eq.s32.totalorder %s39, 0
      %p254 = por %p252, %p253
      %p255 = scmp.ne.s32.totalorder %s244, %s247
      %p256 = scmp.eq.s32.totalorder %s44, 7
      %p257 = por %p255, %p256
      %p258 = scmp.ne.s32.totalorder %s247, %s248
      %p259 = scmp.eq.s32.totalorder %s44, 0
      %p260 = por %p258, %p259
      %p261 = scmp.ne.s32.totalorder %s247, %s248
      %p262 = scmp.eq.s32.totalorder %s45, 7
      %p263 = por %p261, %p262
      %p265 = scmp.ne.s32.totalorder %s248, %s264
      %p266 = scmp.eq.s32.totalorder %s45, 0
      %p267 = por %p265, %p266
      %s268 = ssub.s32 %s47, %s54
      %p269 = scmp.eq.s32.totalorder %s268, 0
      %s271 = sadd.s32 %s270, 1
      %s272 = scalar_select %p269, %s270, %s271
      %p275 = pneg %p269
      %p276 = scmp.eq.s32.totalorder %s39, 7
      %p277 = por %p275, %p276
      %p278 = scmp.ne.s32.totalorder %s270, %s273
      %p279 = scmp.eq.s32.totalorder %s39, 0
      %p280 = por %p278, %p279
      %p281 = scmp.ne.s32.totalorder %s270, %s273
      %p282 = scmp.eq.s32.totalorder %s44, 7
      %p283 = por %p281, %p282
      %p284 = scmp.ne.s32.totalorder %s273, %s274
      %p285 = scmp.eq.s32.totalorder %s44, 0
      %p286 = por %p284, %p285
      %p287 = scmp.ne.s32.totalorder %s273, %s274
      %p288 = scmp.eq.s32.totalorder %s45, 7
      %p289 = por %p287, %p288
      %p291 = scmp.ne.s32.totalorder %s274, %s290
      %p292 = scmp.eq.s32.totalorder %s45, 0
      %p293 = por %p291, %p292
      %s294 = ssub.s32 %s47, %s54
      %p295 = scmp.eq.s32.totalorder %s294, 0
      %s297 = sadd.s32 %s296, 1
      %s298 = scalar_select %p295, %s296, %s297
      %p301 = pneg %p295
      %p302 = scmp.eq.s32.totalorder %s39, 7
      %p303 = por %p301, %p302
      %p304 = scmp.ne.s32.totalorder %s296, %s299
      %p305 = scmp.eq.s32.totalorder %s39, 0
      %p306 = por %p304, %p305
      %p307 = scmp.ne.s32.totalorder %s296, %s299
      %p308 = scmp.eq.s32.totalorder %s44, 7
      %p309 = por %p307, %p308
      %p310 = scmp.ne.s32.totalorder %s299, %s300
      %p311 = scmp.eq.s32.totalorder %s44, 0
      %p312 = por %p310, %p311
      %p313 = scmp.ne.s32.totalorder %s299, %s300
      %p314 = scmp.eq.s32.totalorder %s45, 7
      %p315 = por %p313, %p314
      %p317 = scmp.ne.s32.totalorder %s300, %s316
      %p318 = scmp.eq.s32.totalorder %s45, 0
      %p319 = por %p317, %p318
      %s320 = ssub.s32 %s47, %s54
      %p321 = scmp.eq.s32.totalorder %s320, 0
      %s323 = sadd.s32 %s322, 1
      %s324 = scalar_select %p321, %s322, %s323
      %p327 = pneg %p321
      %p328 = scmp.eq.s32.totalorder %s39, 7
      %p329 = por %p327, %p328
      %p330 = scmp.ne.s32.totalorder %s322, %s325
      %p331 = scmp.eq.s32.totalorder %s39, 0
      %p332 = por %p330, %p331
      %p333 = scmp.ne.s32.totalorder %s322, %s325
      %p334 = scmp.eq.s32.totalorder %s44, 7
      %p335 = por %p333, %p334
      %p336 = scmp.ne.s32.totalorder %s325, %s326
      %p337 = scmp.eq.s32.totalorder %s44, 0
      %p338 = por %p336, %p337
      %p339 = scmp.ne.s32.totalorder %s325, %s326
      %p340 = scmp.eq.s32.totalorder %s45, 7
      %p341 = por %p339, %p340
      %p343 = scmp.ne.s32.totalorder %s326, %s342
      %p344 = scmp.eq.s32.totalorder %s45, 0
      %p345 = por %p343, %p344
      %s346 = ssub.s32 %s47, %s54
      %p347 = scmp.eq.s32.totalorder %s346, 0
      %s349 = sadd.s32 %s348, 1
      %s350 = scalar_select %p347, %s348, %s349
      %p353 = pneg %p347
      %p354 = scmp.eq.s32.totalorder %s39, 7
      %p355 = por %p353, %p354
      %p356 = scmp.ne.s32.totalorder %s348, %s351
      %p357 = scmp.eq.s32.totalorder %s39, 0
      %p358 = por %p356, %p357
      %p359 = scmp.ne.s32.totalorder %s348, %s351
      %p360 = scmp.eq.s32.totalorder %s44, 7
      %p361 = por %p359, %p360
      %p362 = scmp.ne.s32.totalorder %s351, %s352
      %p363 = scmp.eq.s32.totalorder %s44, 0
      %p364 = por %p362, %p363
      %p365 = scmp.ne.s32.totalorder %s351, %s352
      %p366 = scmp.eq.s32.totalorder %s45, 7
      %p367 = por %p365, %p366
      %p369 = scmp.ne.s32.totalorder %s352, %s368
      %p370 = scmp.eq.s32.totalorder %s45, 0
      %p371 = por %p369, %p370
      %s372 = ssub.s32 %s47, %s54
      %p373 = scmp.eq.s32.totalorder %s372, 0
      %s375 = sadd.s32 %s374, 1
      %s376 = scalar_select %p373, %s374, %s375
      %p379 = pneg %p373
      %p380 = scmp.eq.s32.totalorder %s39, 7
      %p381 = por %p379, %p380
      %p382 = scmp.ne.s32.totalorder %s374, %s377
      %p383 = scmp.eq.s32.totalorder %s39, 0
      %p384 = por %p382, %p383
      %p385 = scmp.ne.s32.totalorder %s374, %s377
      %p386 = scmp.eq.s32.totalorder %s44, 7
      %p387 = por %p385, %p386
      %p388 = scmp.ne.s32.totalorder %s377, %s378
      %p389 = scmp.eq.s32.totalorder %s44, 0
      %p390 = por %p388, %p389
      %p391 = scmp.ne.s32.totalorder %s377, %s378
      %p392 = scmp.eq.s32.totalorder %s45, 7
      %p393 = por %p391, %p392
      %p395 = scmp.ne.s32.totalorder %s378, %s394
      %p396 = scmp.eq.s32.totalorder %s45, 0
      %p397 = por %p395, %p396
      %s398 = ssub.s32 %s47, %s54
      %p399 = scmp.eq.s32.totalorder %s398, 0
      %s401 = sadd.s32 %s400, 1
      %s402 = scalar_select %p399, %s400, %s401
      %p405 = pneg %p399
      %p406 = scmp.eq.s32.totalorder %s39, 7
      %p407 = por %p405, %p406
      %p408 = scmp.ne.s32.totalorder %s400, %s403
      %p409 = scmp.eq.s32.totalorder %s39, 0
      %p410 = por %p408, %p409
      %p411 = scmp.ne.s32.totalorder %s400, %s403
      %p412 = scmp.eq.s32.totalorder %s44, 7
      %p413 = por %p411, %p412
      %p414 = scmp.ne.s32.totalorder %s403, %s404
      %p415 = scmp.eq.s32.totalorder %s44, 0
      %p416 = por %p414, %p415
      %p417 = scmp.ne.s32.totalorder %s403, %s404
      %p418 = scmp.eq.s32.totalorder %s45, 7
      %p419 = por %p417, %p418
      %p421 = scmp.ne.s32.totalorder %s404, %s420
      %p422 = scmp.eq.s32.totalorder %s45, 0
      %p423 = por %p421, %p422
      %s424 = ssub.s32 %s47, %s54
      %p425 = scmp.eq.s32.totalorder %s424, 0
      %s427 = sadd.s32 %s426, 1
      %s428 = scalar_select %p425, %s426, %s427
      %p431 = pneg %p425
      %p432 = scmp.eq.s32.totalorder %s39, 7
      %p433 = por %p431, %p432
      %p434 = scmp.ne.s32.totalorder %s426, %s429
      %p435 = scmp.eq.s32.totalorder %s39, 0
      %p436 = por %p434, %p435
      %p437 = scmp.ne.s32.totalorder %s426, %s429
      %p438 = scmp.eq.s32.totalorder %s44, 7
      %p439 = por %p437, %p438
      %p440 = scmp.ne.s32.totalorder %s429, %s430
      %p441 = scmp.eq.s32.totalorder %s44, 0
      %p442 = por %p440, %p441
      %p443 = scmp.ne.s32.totalorder %s429, %s430
      %p444 = scmp.eq.s32.totalorder %s45, 7
      %p445 = por %p443, %p444
      %p447 = scmp.ne.s32.totalorder %s430, %s446
      %p448 = scmp.eq.s32.totalorder %s45, 0
      %p449 = por %p447, %p448
      %s451 = sadd.s32 %s450, 1
      %p454 = scmp.eq.s32.totalorder %s39, 7
      %p455 = scmp.ne.s32.totalorder %s450, %s452
      %p456 = scmp.eq.s32.totalorder %s39, 0
      %p457 = por %p455, %p456
      %p458 = scmp.ne.s32.totalorder %s450, %s452
      %p459 = scmp.eq.s32.totalorder %s44, 7
      %p460 = por %p458, %p459
      %p461 = scmp.ne.s32.totalorder %s452, %s453
      %p462 = scmp.eq.s32.totalorder %s44, 0
      %p463 = por %p461, %p462
      %p464 = scmp.ne.s32.totalorder %s452, %s453
      %p465 = scmp.eq.s32.totalorder %s45, 7
      %p466 = por %p464, %p465
      %p468 = scmp.ne.s32.totalorder %s453, %s467
      %p469 = scmp.eq.s32.totalorder %s45, 0
      %p470 = por %p468, %p469
      %s472 = sadd.s32 %s471, 1
      %p475 = scmp.eq.s32.totalorder %s39, 7
      %p476 = scmp.ne.s32.totalorder %s471, %s473
      %p477 = scmp.eq.s32.totalorder %s39, 0
      %p478 = por %p476, %p477
      %p479 = scmp.ne.s32.totalorder %s471, %s473
      %p480 = scmp.eq.s32.totalorder %s44, 7
      %p481 = por %p479, %p480
      %p482 = scmp.ne.s32.totalorder %s473, %s474
      %p483 = scmp.eq.s32.totalorder %s44, 0
      %p484 = por %p482, %p483
      %p485 = scmp.ne.s32.totalorder %s473, %s474
      %p486 = scmp.eq.s32.totalorder %s45, 7
      %p487 = por %p485, %p486
      %p489 = scmp.ne.s32.totalorder %s474, %s488
      %p490 = scmp.eq.s32.totalorder %s45, 0
      %p491 = por %p489, %p490
      %s493 = sadd.s32 %s492, 1
      %p496 = scmp.eq.s32.totalorder %s39, 7
      %p497 = scmp.ne.s32.totalorder %s492, %s494
      %p498 = scmp.eq.s32.totalorder %s39, 0
      %p499 = por %p497, %p498
      %p500 = scmp.ne.s32.totalorder %s492, %s494
      %p501 = scmp.eq.s32.totalorder %s44, 7
      %p502 = por %p500, %p501
      %p503 = scmp.ne.s32.totalorder %s494, %s495
      %p504 = scmp.eq.s32.totalorder %s44, 0
      %p505 = por %p503, %p504
      %p506 = scmp.ne.s32.totalorder %s494, %s495
      %p507 = scmp.eq.s32.totalorder %s45, 7
      %p508 = por %p506, %p507
      %p510 = scmp.ne.s32.totalorder %s495, %s509
      %p511 = scmp.eq.s32.totalorder %s45, 0
      %p512 = por %p510, %p511
      %s513 = ssub.s32 %s46, %s58
      %p514 = scmp.eq.s32.totalorder %s513, 0
      %s516 = sadd.s32 %s515, 1
      %s517 = scalar_select %p514, %s515, %s516
      %p520 = pneg %p514
      %p521 = scmp.eq.s32.totalorder %s39, 7
      %p522 = por %p520, %p521
      %p523 = scmp.ne.s32.totalorder %s515, %s518
      %p524 = scmp.eq.s32.totalorder %s39, 0
      %p525 = por %p523, %p524
      %p526 = scmp.ne.s32.totalorder %s515, %s518
      %p527 = scmp.eq.s32.totalorder %s44, 7
      %p528 = por %p526, %p527
      %p529 = scmp.ne.s32.totalorder %s518, %s519
      %p530 = scmp.eq.s32.totalorder %s44, 0
      %p531 = por %p529, %p530
      %p532 = scmp.ne.s32.totalorder %s518, %s519
      %p533 = scmp.eq.s32.totalorder %s45, 7
      %p534 = por %p532, %p533
      %p536 = scmp.ne.s32.totalorder %s519, %s535
      %p537 = scmp.eq.s32.totalorder %s45, 0
      %p538 = por %p536, %p537
      %p539 = scmp.le.s32.totalorder 1, %s39
      %p540 = scmp.lt.s32.totalorder %s39, 9
      %p541 = pnand %p539, %p540
      %p542 = pneg %p541
      // Predicated region
      $region9: #{forward.1} parent=5 // pred_check
        _
      $region10: #{forward.1} parent=5 // pred_check_branch
        %544 = sbr.rel (%p541) target = $region12
      $region11: #{forward.1} parent=5 // pred_region
        %s545 = ssub.s32 %s39, 1
        // Predicated region
        $region13: #{forward.1} parent=11 // pred_check
          %p546 = pneg %p98
        $region14: #{forward.1} parent=11 // pred_check_branch
          %548 = sbr.rel (%p546) target = $region16
        $region15: #{forward.1} parent=11 // pred_region
          %s550 = ssub.s32 512, 512
          %551 = vsyncadd [#allocation11], %s550
          %s552 = sshll.u32 [#allocation10], 4
          %s553 = int_to_ptr.vmem [resolvable:$true] %s552
          %558 = dma.hbm_to_vmem [thread:$0]  %s2, 512, %s553, [#allocation11], 128, 128, 8
        $region16: #{forward.1} parent=11 // pred_fallthru
          _
        // Predicated region
        $region17: #{forward.1} parent=11 // pred_check
          %p559 = pneg %p119
        $region18: #{forward.1} parent=11 // pred_check_branch
          %561 = sbr.rel (%p559) target = $region20
        $region19: #{forward.1} parent=11 // pred_region
          %s563 = ssub.s32 16, 16
          %564 = vsyncadd [#allocation11], %s563
          %s566 = sshll.u32 [#allocation12], 4
          %s567 = int_to_ptr.vmem [resolvable:$true] %s566
          %569 = dma.hbm_to_vmem [thread:$0]  %s3, 16, %s567, [#allocation11]
        $region20: #{forward.1} parent=11 // pred_fallthru
          _
        // Predicated region
        $region21: #{forward.1} parent=11 // pred_check
          %p570 = pneg %p140
        $region22: #{forward.1} parent=11 // pred_check_branch
          %572 = sbr.rel (%p570) target = $region24
        $region23: #{forward.1} parent=11 // pred_region
          %s574 = ssub.s32 16, 16
          %575 = vsyncadd [#allocation14], %s574
          %s577 = sshll.u32 [#allocation13], 4
          %s578 = int_to_ptr.vmem [resolvable:$true] %s577
          %580 = dma.hbm_to_vmem [thread:$0]  %s4, 16, %s578, [#allocation14]
        $region24: #{forward.1} parent=11 // pred_fallthru
          _
        // Predicated region
        $region25: #{forward.1} parent=11 // pred_check
          %p581 = pneg %p161
        $region26: #{forward.1} parent=11 // pred_check_branch
          %583 = sbr.rel (%p581) target = $region28
        $region27: #{forward.1} parent=11 // pred_region
          %s585 = ssub.s32 1024, 1024
          %586 = vsyncadd [#allocation14], %s585
          %s587 = sshll.u32 [#allocation15], 4
          %s588 = int_to_ptr.vmem [resolvable:$true] %s587
          %593 = dma.hbm_to_vmem [thread:$0]  %s5, 1024, %s588, [#allocation14], 128, 128, 8
        $region28: #{forward.1} parent=11 // pred_fallthru
          _
        // Predicated region
        $region29: #{forward.1} parent=11 // pred_check
          %p594 = pneg %p182
        $region30: #{forward.1} parent=11 // pred_check_branch
          %596 = sbr.rel (%p594) target = $region32
        $region31: #{forward.1} parent=11 // pred_region
          %s598 = ssub.s32 16, 16
          %599 = vsyncadd [#allocation17], %s598
          %s601 = sshll.u32 [#allocation16], 4
          %s602 = int_to_ptr.vmem [resolvable:$true] %s601
          %604 = dma.hbm_to_vmem [thread:$0]  %s6, 16, %s602, [#allocation17]
        $region32: #{forward.1} parent=11 // pred_fallthru
          _
        // Predicated region
        $region33: #{forward.1} parent=11 // pred_check
          %p605 = pneg %p463
        $region34: #{forward.1} parent=11 // pred_check_branch
          %607 = sbr.rel (%p605) target = $region36
        $region35: #{forward.1} parent=11 // pred_region
          %s609 = ssub.s32 1024, 1024
          %610 = vsyncadd [#allocation11], %s609
          %s611 = sshll.u32 [#allocation28], 4
          %s612 = int_to_ptr.vmem [resolvable:$true] %s611
          %617 = dma.hbm_to_vmem [thread:$0]  %s17, 1024, %s612, [#allocation11], 128, 128, 8
        $region36: #{forward.1} parent=11 // pred_fallthru
          _
        // Predicated region
        $region37: #{forward.1} parent=11 // pred_check
          %p618 = pneg %p484
        $region38: #{forward.1} parent=11 // pred_check_branch
          %620 = sbr.rel (%p618) target = $region40
        $region39: #{forward.1} parent=11 // pred_region
          %s622 = ssub.s32 16, 16
          %623 = vsyncadd [#allocation14], %s622
          %s625 = sshll.u32 [#allocation29], 4
          %s626 = int_to_ptr.vmem [resolvable:$true] %s625
          %628 = dma.hbm_to_vmem [thread:$0]  %s18, 16, %s626, [#allocation14]
        $region40: #{forward.1} parent=11 // pred_fallthru
          _
        // Predicated region
        $region41: #{forward.1} parent=11 // pred_check
          %p629 = pneg %p505
        $region42: #{forward.1} parent=11 // pred_check_branch
          %631 = sbr.rel (%p629) target = $region44
        $region43: #{forward.1} parent=11 // pred_region
          %s633 = ssub.s32 2048, 2048
          %634 = vsyncadd [#allocation17], %s633
          %s635 = sshll.u32 [#allocation30], 4
          %s636 = int_to_ptr.vmem [resolvable:$true] %s635
          %641 = dma.hbm_to_vmem [thread:$0]  %s19, 2048, %s636, [#allocation17], 128, 128, 8
        $region44: #{forward.1} parent=11 // pred_fallthru
          _
      $region12: #{forward.1} parent=5 // pred_fallthru
        _
      %p642 = scmp.lt.s32.totalorder %s39, 8
      // Predicated region
      $region45: #{forward.1} parent=5 // pred_check
        %p643 = pneg %p642
      $region46: #{forward.1} parent=5 // pred_check_branch
        %645 = sbr.rel (%p643) target = $region48
      $region47: #{forward.1} parent=5 // pred_region
        // Predicated region
        $region49: #{forward.1} parent=47 // pred_check
          %p646 = pneg %p71
        $region50: #{forward.1} parent=47 // pred_check_branch
          %648 = sbr.rel (%p646) target = $region52
        $region51: #{forward.1} parent=47 // pred_region
          %s649 = sand.u32 %s39, 1
          %s650 = scalar_lea.sflag [#allocation8], %s649
          %s651 = sand.u32 %s61, 1
          %s652 = smul.addr %s651, 16
          %s653 = scalar_lea.vmem [#allocation7], %s652
          %s655 = ssub.s32 256, 256
          %656 = vsyncadd %s650, %s655
          %s657 = smul.addr %s46, 2
          %s658 = smul.addr %s657, 128
          %s659 = scalar_lea.hbm %s1, %s658
          %s660 = sshll.u32 %s653, 4
          %s661 = int_to_ptr.vmem [resolvable:$true] %s660
          %666 = dma.hbm_to_vmem [thread:$0]  %s659, 256, %s661, %s650, 128, 128, 8
        $region52: #{forward.1} parent=47 // pred_fallthru
          _
        // Predicated region
        $region53: #{forward.1} parent=47 // pred_check
          %p667 = pneg %p202
        $region54: #{forward.1} parent=47 // pred_check_branch
          %669 = sbr.rel (%p667) target = $region56
        $region55: #{forward.1} parent=47 // pred_region
          %s670 = sand.u32 %s39, 1
          %s671 = scalar_lea.sflag [#allocation8], %s670
          %s672 = sand.u32 %s192, 1
          %s673 = smul.addr %s672, 64
          %s674 = scalar_lea.vmem [#allocation18], %s673
          %s676 = ssub.s32 1024, 1024
          %677 = vsyncadd %s671, %s676
          %s678 = smul.addr %s47, 8
          %s679 = smul.addr %s678, 128
          %s680 = scalar_lea.hbm %s7, %s679
          %s681 = sshll.u32 %s674, 4
          %s682 = int_to_ptr.vmem [resolvable:$true] %s681
          %687 = dma.hbm_to_vmem [thread:$0]  %s680, 1024, %s682, %s671, 128, 128, 8
        $region56: #{forward.1} parent=47 // pred_fallthru
          _
        // Predicated region
        $region57: #{forward.1} parent=47 // pred_check
          %p688 = pneg %p228
        $region58: #{forward.1} parent=47 // pred_check_branch
          %690 = sbr.rel (%p688) target = $region60
        $region59: #{forward.1} parent=47 // pred_region
          %s691 = sand.u32 %s39, 1
          %s692 = scalar_lea.sflag [#allocation8], %s691
          %s693 = sand.u32 %s218, 1
          %s694 = scalar_lea.vmem [#allocation19], %s693
          %s696 = ssub.s32 16, 16
          %697 = vsyncadd %s692, %s696
          %s698 = smul.addr %s47, 16
          %s699 = scalar_lea.hbm %s8, %s698
          %s701 = sshll.u32 %s694, 4
          %s702 = int_to_ptr.vmem [resolvable:$true] %s701
          %704 = dma.hbm_to_vmem [thread:$0]  %s699, 16, %s702, %s692
        $region60: #{forward.1} parent=47 // pred_fallthru
          _
        // Predicated region
        $region61: #{forward.1} parent=47 // pred_check
          %p705 = pneg %p254
        $region62: #{forward.1} parent=47 // pred_check_branch
          %707 = sbr.rel (%p705) target = $region64
        $region63: #{forward.1} parent=47 // pred_region
          %s708 = sand.u32 %s39, 1
          %s709 = scalar_lea.sflag [#allocation8], %s708
          %s710 = sand.u32 %s244, 1
          %s711 = scalar_lea.vmem [#allocation20], %s710
          %s713 = ssub.s32 16, 16
          %714 = vsyncadd %s709, %s713
          %s715 = smul.addr %s47, 16
          %s716 = scalar_lea.hbm %s9, %s715
          %s718 = sshll.u32 %s711, 4
          %s719 = int_to_ptr.vmem [resolvable:$true] %s718
          %721 = dma.hbm_to_vmem [thread:$0]  %s716, 16, %s719, %s709
        $region64: #{forward.1} parent=47 // pred_fallthru
          _
        // Predicated region
        $region65: #{forward.1} parent=47 // pred_check
          %p722 = pneg %p280
        $region66: #{forward.1} parent=47 // pred_check_branch
          %724 = sbr.rel (%p722) target = $region68
        $region67: #{forward.1} parent=47 // pred_region
          %s725 = sand.u32 %s39, 1
          %s726 = scalar_lea.sflag [#allocation8], %s725
          %s727 = sand.u32 %s270, 1
          %s728 = scalar_lea.vmem [#allocation21], %s727
          %s730 = ssub.s32 16, 16
          %731 = vsyncadd %s726, %s730
          %s732 = smul.addr %s47, 16
          %s733 = scalar_lea.hbm %s10, %s732
          %s735 = sshll.u32 %s728, 4
          %s736 = int_to_ptr.vmem [resolvable:$true] %s735
          %738 = dma.hbm_to_vmem [thread:$0]  %s733, 16, %s736, %s726
        $region68: #{forward.1} parent=47 // pred_fallthru
          _
        // Predicated region
        $region69: #{forward.1} parent=47 // pred_check
          %p739 = pneg %p306
        $region70: #{forward.1} parent=47 // pred_check_branch
          %741 = sbr.rel (%p739) target = $region72
        $region71: #{forward.1} parent=47 // pred_region
          %s742 = sand.u32 %s39, 1
          %s743 = scalar_lea.sflag [#allocation8], %s742
          %s744 = sand.u32 %s296, 1
          %s745 = smul.addr %s744, 4
          %s746 = scalar_lea.vmem [#allocation22], %s745
          %s748 = ssub.s32 64, 64
          %749 = vsyncadd %s743, %s748
          %s750 = smul.addr %s47, 64
          %s751 = scalar_lea.hbm %s11, %s750
          %s753 = sshll.u32 %s746, 4
          %s754 = int_to_ptr.vmem [resolvable:$true] %s753
          %756 = dma.hbm_to_vmem [thread:$0]  %s751, 64, %s754, %s743
        $region72: #{forward.1} parent=47 // pred_fallthru
          _
        // Predicated region
        $region73: #{forward.1} parent=47 // pred_check
          %p757 = pneg %p332
        $region74: #{forward.1} parent=47 // pred_check_branch
          %759 = sbr.rel (%p757) target = $region76
        $region75: #{forward.1} parent=47 // pred_region
          %s760 = sand.u32 %s39, 1
          %s761 = scalar_lea.sflag [#allocation8], %s760
          %s762 = sand.u32 %s322, 1
          %s763 = scalar_lea.vmem [#allocation23], %s762
          %s765 = ssub.s32 16, 16
          %766 = vsyncadd %s761, %s765
          %s767 = smul.addr %s47, 16
          %s768 = scalar_lea.hbm %s12, %s767
          %s770 = sshll.u32 %s763, 4
          %s771 = int_to_ptr.vmem [resolvable:$true] %s770
          %773 = dma.hbm_to_vmem [thread:$0]  %s768, 16, %s771, %s761
        $region76: #{forward.1} parent=47 // pred_fallthru
          _
        // Predicated region
        $region77: #{forward.1} parent=47 // pred_check
          %p774 = pneg %p358
        $region78: #{forward.1} parent=47 // pred_check_branch
          %776 = sbr.rel (%p774) target = $region80
        $region79: #{forward.1} parent=47 // pred_region
          %s777 = sand.u32 %s39, 1
          %s778 = scalar_lea.sflag [#allocation8], %s777
          %s779 = sand.u32 %s348, 1
          %s780 = scalar_lea.vmem [#allocation24], %s779
          %s782 = ssub.s32 16, 16
          %783 = vsyncadd %s778, %s782
          %s784 = smul.addr %s47, 16
          %s785 = scalar_lea.hbm %s13, %s784
          %s787 = sshll.u32 %s780, 4
          %s788 = int_to_ptr.vmem [resolvable:$true] %s787
          %790 = dma.hbm_to_vmem [thread:$0]  %s785, 16, %s788, %s778
        $region80: #{forward.1} parent=47 // pred_fallthru
          _
        // Predicated region
        $region81: #{forward.1} parent=47 // pred_check
          %p791 = pneg %p384
        $region82: #{forward.1} parent=47 // pred_check_branch
          %793 = sbr.rel (%p791) target = $region84
        $region83: #{forward.1} parent=47 // pred_region
          %s794 = sand.u32 %s39, 1
          %s795 = scalar_lea.sflag [#allocation8], %s794
          %s796 = sand.u32 %s374, 1
          %s797 = scalar_lea.vmem [#allocation25], %s796
          %s799 = ssub.s32 16, 16
          %800 = vsyncadd %s795, %s799
          %s801 = smul.addr %s47, 16
          %s802 = scalar_lea.hbm %s14, %s801
          %s804 = sshll.u32 %s797, 4
          %s805 = int_to_ptr.vmem [resolvable:$true] %s804
          %807 = dma.hbm_to_vmem [thread:$0]  %s802, 16, %s805, %s795
        $region84: #{forward.1} parent=47 // pred_fallthru
          _
        // Predicated region
        $region85: #{forward.1} parent=47 // pred_check
          %p808 = pneg %p410
        $region86: #{forward.1} parent=47 // pred_check_branch
          %810 = sbr.rel (%p808) target = $region88
        $region87: #{forward.1} parent=47 // pred_region
          %s811 = sand.u32 %s39, 1
          %s812 = scalar_lea.sflag [#allocation8], %s811
          %s813 = sand.u32 %s400, 1
          %s814 = smul.addr %s813, 128
          %s815 = scalar_lea.vmem [#allocation26], %s814
          %s817 = ssub.s32 2048, 2048
          %818 = vsyncadd %s812, %s817
          %s819 = smul.addr %s47, 16
          %s820 = smul.addr %s819, 128
          %s821 = scalar_lea.hbm %s15, %s820
          %s822 = sshll.u32 %s815, 4
          %s823 = int_to_ptr.vmem [resolvable:$true] %s822
          %828 = dma.hbm_to_vmem [thread:$0]  %s821, 2048, %s823, %s812, 128, 128, 8
        $region88: #{forward.1} parent=47 // pred_fallthru
          _
        // Predicated region
        $region89: #{forward.1} parent=47 // pred_check
          %p829 = pneg %p436
        $region90: #{forward.1} parent=47 // pred_check_branch
          %831 = sbr.rel (%p829) target = $region92
        $region91: #{forward.1} parent=47 // pred_region
          %s832 = sand.u32 %s39, 1
          %s833 = scalar_lea.sflag [#allocation8], %s832
          %s834 = sand.u32 %s426, 1
          %s835 = scalar_lea.vmem [#allocation27], %s834
          %s837 = ssub.s32 16, 16
          %838 = vsyncadd %s833, %s837
          %s839 = smul.addr %s47, 16
          %s840 = scalar_lea.hbm %s16, %s839
          %s842 = sshll.u32 %s835, 4
          %s843 = int_to_ptr.vmem [resolvable:$true] %s842
          %845 = dma.hbm_to_vmem [thread:$0]  %s840, 16, %s843, %s833
        $region92: #{forward.1} parent=47 // pred_fallthru
          _
      $region48: #{forward.1} parent=5 // pred_fallthru
        _
      %p846 = scmp.le.s32.totalorder 1, %s39
      %p847 = scmp.lt.s32.totalorder %s39, 9
      %p848 = pnand %p846, %p847
      %p849 = pneg %p848
      // Predicated region
      $region93: #{forward.1} parent=5 // pred_check
        _
      $region94: #{forward.1} parent=5 // pred_check_branch
        %851 = sbr.rel (%p848) target = $region96
      $region95: #{forward.1} parent=5 // pred_region
        %s852 = ssub.s32 %s39, 1
        %s853 = sand.u32 %s44, 1
        %s854 = scalar_lea.sflag [#allocation8], %s853
        %s855 = sand.u32 %s64, 1
        %s856 = smul.addr %s855, 16
        %s857 = scalar_lea.vmem [#allocation7], %s856
        // Predicated region
        $region97: #{forward.1} parent=95 // pred_check
          %p858 = pneg %p77
        $region98: #{forward.1} parent=95 // pred_check_branch
          %860 = sbr.rel (%p858) target = $region100
        $region99: #{forward.1} parent=95 // pred_region
          %861 = dma.done %s854, 256
        $region100: #{forward.1} parent=95 // pred_fallthru
          _
        // Predicated region
        $region101: #{forward.1} parent=95 // pred_check
          %p862 = pneg %p98
        $region102: #{forward.1} parent=95 // pred_check_branch
          %864 = sbr.rel (%p862) target = $region104
        $region103: #{forward.1} parent=95 // pred_region
          %865 = dma.done [#allocation11], 512
        $region104: #{forward.1} parent=95 // pred_fallthru
          _
        // Predicated region
        $region105: #{forward.1} parent=95 // pred_check
          %p866 = pneg %p119
        $region106: #{forward.1} parent=95 // pred_check_branch
          %868 = sbr.rel (%p866) target = $region108
        $region107: #{forward.1} parent=95 // pred_region
          %869 = dma.done [#allocation11], 16
        $region108: #{forward.1} parent=95 // pred_fallthru
          _
        // Predicated region
        $region109: #{forward.1} parent=95 // pred_check
          %p870 = pneg %p140
        $region110: #{forward.1} parent=95 // pred_check_branch
          %872 = sbr.rel (%p870) target = $region112
        $region111: #{forward.1} parent=95 // pred_region
          %873 = dma.done [#allocation14], 16
        $region112: #{forward.1} parent=95 // pred_fallthru
          _
        // Predicated region
        $region113: #{forward.1} parent=95 // pred_check
          %p874 = pneg %p161
        $region114: #{forward.1} parent=95 // pred_check_branch
          %876 = sbr.rel (%p874) target = $region116
        $region115: #{forward.1} parent=95 // pred_region
          %877 = dma.done [#allocation14], 1024
        $region116: #{forward.1} parent=95 // pred_fallthru
          _
        // Predicated region
        $region117: #{forward.1} parent=95 // pred_check
          %p878 = pneg %p182
        $region118: #{forward.1} parent=95 // pred_check_branch
          %880 = sbr.rel (%p878) target = $region120
        $region119: #{forward.1} parent=95 // pred_region
          %881 = dma.done [#allocation17], 16
        $region120: #{forward.1} parent=95 // pred_fallthru
          _
        %s882 = sand.u32 %s44, 1
        %s883 = scalar_lea.sflag [#allocation8], %s882
        %s884 = sand.u32 %s195, 1
        %s885 = smul.addr %s884, 64
        %s886 = scalar_lea.vmem [#allocation18], %s885
        // Predicated region
        $region121: #{forward.1} parent=95 // pred_check
          %p887 = pneg %p208
        $region122: #{forward.1} parent=95 // pred_check_branch
          %889 = sbr.rel (%p887) target = $region124
        $region123: #{forward.1} parent=95 // pred_region
          %890 = dma.done %s883, 1024
        $region124: #{forward.1} parent=95 // pred_fallthru
          _
        %s891 = sand.u32 %s44, 1
        %s892 = scalar_lea.sflag [#allocation8], %s891
        %s893 = sand.u32 %s221, 1
        %s894 = scalar_lea.vmem [#allocation19], %s893
        // Predicated region
        $region125: #{forward.1} parent=95 // pred_check
          %p895 = pneg %p234
        $region126: #{forward.1} parent=95 // pred_check_branch
          %897 = sbr.rel (%p895) target = $region128
        $region127: #{forward.1} parent=95 // pred_region
          %898 = dma.done %s892, 16
        $region128: #{forward.1} parent=95 // pred_fallthru
          _
        %s899 = sand.u32 %s44, 1
        %s900 = scalar_lea.sflag [#allocation8], %s899
        %s901 = sand.u32 %s247, 1
        %s902 = scalar_lea.vmem [#allocation20], %s901
        // Predicated region
        $region129: #{forward.1} parent=95 // pred_check
          %p903 = pneg %p260
        $region130: #{forward.1} parent=95 // pred_check_branch
          %905 = sbr.rel (%p903) target = $region132
        $region131: #{forward.1} parent=95 // pred_region
          %906 = dma.done %s900, 16
        $region132: #{forward.1} parent=95 // pred_fallthru
          _
        %s907 = sand.u32 %s44, 1
        %s908 = scalar_lea.sflag [#allocation8], %s907
        %s909 = sand.u32 %s273, 1
        %s910 = scalar_lea.vmem [#allocation21], %s909
        // Predicated region
        $region133: #{forward.1} parent=95 // pred_check
          %p911 = pneg %p286
        $region134: #{forward.1} parent=95 // pred_check_branch
          %913 = sbr.rel (%p911) target = $region136
        $region135: #{forward.1} parent=95 // pred_region
          %914 = dma.done %s908, 16
        $region136: #{forward.1} parent=95 // pred_fallthru
          _
        %s915 = sand.u32 %s44, 1
        %s916 = scalar_lea.sflag [#allocation8], %s915
        %s917 = sand.u32 %s299, 1
        %s918 = smul.addr %s917, 4
        %s919 = scalar_lea.vmem [#allocation22], %s918
        // Predicated region
        $region137: #{forward.1} parent=95 // pred_check
          %p920 = pneg %p312
        $region138: #{forward.1} parent=95 // pred_check_branch
          %922 = sbr.rel (%p920) target = $region140
        $region139: #{forward.1} parent=95 // pred_region
          %923 = dma.done %s916, 64
        $region140: #{forward.1} parent=95 // pred_fallthru
          _
        %s924 = sand.u32 %s44, 1
        %s925 = scalar_lea.sflag [#allocation8], %s924
        %s926 = sand.u32 %s325, 1
        %s927 = scalar_lea.vmem [#allocation23], %s926
        // Predicated region
        $region141: #{forward.1} parent=95 // pred_check
          %p928 = pneg %p338
        $region142: #{forward.1} parent=95 // pred_check_branch
          %930 = sbr.rel (%p928) target = $region144
        $region143: #{forward.1} parent=95 // pred_region
          %931 = dma.done %s925, 16
        $region144: #{forward.1} parent=95 // pred_fallthru
          _
        %s932 = sand.u32 %s44, 1
        %s933 = scalar_lea.sflag [#allocation8], %s932
        %s934 = sand.u32 %s351, 1
        %s935 = scalar_lea.vmem [#allocation24], %s934
        // Predicated region
        $region145: #{forward.1} parent=95 // pred_check
          %p936 = pneg %p364
        $region146: #{forward.1} parent=95 // pred_check_branch
          %938 = sbr.rel (%p936) target = $region148
        $region147: #{forward.1} parent=95 // pred_region
          %939 = dma.done %s933, 16
        $region148: #{forward.1} parent=95 // pred_fallthru
          _
        %s940 = sand.u32 %s44, 1
        %s941 = scalar_lea.sflag [#allocation8], %s940
        %s942 = sand.u32 %s377, 1
        %s943 = scalar_lea.vmem [#allocation25], %s942
        // Predicated region
        $region149: #{forward.1} parent=95 // pred_check
          %p944 = pneg %p390
        $region150: #{forward.1} parent=95 // pred_check_branch
          %946 = sbr.rel (%p944) target = $region152
        $region151: #{forward.1} parent=95 // pred_region
          %947 = dma.done %s941, 16
        $region152: #{forward.1} parent=95 // pred_fallthru
          _
        %s948 = sand.u32 %s44, 1
        %s949 = scalar_lea.sflag [#allocation8], %s948
        %s950 = sand.u32 %s403, 1
        %s951 = smul.addr %s950, 128
        %s952 = scalar_lea.vmem [#allocation26], %s951
        // Predicated region
        $region153: #{forward.1} parent=95 // pred_check
          %p953 = pneg %p416
        $region154: #{forward.1} parent=95 // pred_check_branch
          %955 = sbr.rel (%p953) target = $region156
        $region155: #{forward.1} parent=95 // pred_region
          %956 = dma.done %s949, 2048
        $region156: #{forward.1} parent=95 // pred_fallthru
          _
        %s957 = sand.u32 %s44, 1
        %s958 = scalar_lea.sflag [#allocation8], %s957
        %s959 = sand.u32 %s429, 1
        %s960 = scalar_lea.vmem [#allocation27], %s959
        // Predicated region
        $region157: #{forward.1} parent=95 // pred_check
          %p961 = pneg %p442
        $region158: #{forward.1} parent=95 // pred_check_branch
          %963 = sbr.rel (%p961) target = $region160
        $region159: #{forward.1} parent=95 // pred_region
          %964 = dma.done %s958, 16
        $region160: #{forward.1} parent=95 // pred_fallthru
          _
        // Predicated region
        $region161: #{forward.1} parent=95 // pred_check
          %p965 = pneg %p463
        $region162: #{forward.1} parent=95 // pred_check_branch
          %967 = sbr.rel (%p965) target = $region164
        $region163: #{forward.1} parent=95 // pred_region
          %968 = dma.done [#allocation11], 1024
        $region164: #{forward.1} parent=95 // pred_fallthru
          _
        // Predicated region
        $region165: #{forward.1} parent=95 // pred_check
          %p969 = pneg %p484
        $region166: #{forward.1} parent=95 // pred_check_branch
          %971 = sbr.rel (%p969) target = $region168
        $region167: #{forward.1} parent=95 // pred_region
          %972 = dma.done [#allocation14], 16
        $region168: #{forward.1} parent=95 // pred_fallthru
          _
        // Predicated region
        $region169: #{forward.1} parent=95 // pred_check
          %p973 = pneg %p505
        $region170: #{forward.1} parent=95 // pred_check_branch
          %975 = sbr.rel (%p973) target = $region172
        $region171: #{forward.1} parent=95 // pred_region
          %976 = dma.done [#allocation17], 2048
        $region172: #{forward.1} parent=95 // pred_fallthru
          _
        %s977 = sand.u32 %s44, 1
        %s978 = scalar_lea.sflag [#allocation8], %s977
        %s979 = sand.u32 %s64, 1
        %s980 = smul.addr %s979, 16
        %s981 = scalar_lea.vmem [#allocation7], %s980
        %p982 = pneg %p77
        %p983 = pneg %p74
        %p984 = pneg %p98
        %p985 = pneg %p95
        %p986 = pneg %p119
        %p987 = pneg %p116
        %p988 = pneg %p140
        %p989 = pneg %p137
        %p990 = pneg %p161
        %p991 = pneg %p158
        %p992 = pneg %p182
        %p993 = pneg %p179
        %s994 = sand.u32 %s44, 1
        %s995 = scalar_lea.sflag [#allocation8], %s994
        %s996 = sand.u32 %s195, 1
        %s997 = smul.addr %s996, 64
        %s998 = scalar_lea.vmem [#allocation18], %s997
        %p999 = pneg %p208
        %p1000 = pneg %p205
        %s1001 = sand.u32 %s44, 1
        %s1002 = scalar_lea.sflag [#allocation8], %s1001
        %s1003 = sand.u32 %s221, 1
        %s1004 = scalar_lea.vmem [#allocation19], %s1003
        %p1005 = pneg %p234
        %p1006 = pneg %p231
        %s1007 = sand.u32 %s44, 1
        %s1008 = scalar_lea.sflag [#allocation8], %s1007
        %s1009 = sand.u32 %s247, 1
        %s1010 = scalar_lea.vmem [#allocation20], %s1009
        %p1011 = pneg %p260
        %p1012 = pneg %p257
        %s1013 = sand.u32 %s44, 1
        %s1014 = scalar_lea.sflag [#allocation8], %s1013
        %s1015 = sand.u32 %s273, 1
        %s1016 = scalar_lea.vmem [#allocation21], %s1015
        %p1017 = pneg %p286
        %p1018 = pneg %p283
        %s1019 = sand.u32 %s44, 1
        %s1020 = scalar_lea.sflag [#allocation8], %s1019
        %s1021 = sand.u32 %s299, 1
        %s1022 = smul.addr %s1021, 4
        %s1023 = scalar_lea.vmem [#allocation22], %s1022
        %p1024 = pneg %p312
        %p1025 = pneg %p309
        %s1026 = sand.u32 %s44, 1
        %s1027 = scalar_lea.sflag [#allocation8], %s1026
        %s1028 = sand.u32 %s325, 1
        %s1029 = scalar_lea.vmem [#allocation23], %s1028
        %p1030 = pneg %p338
        %p1031 = pneg %p335
        %s1032 = sand.u32 %s44, 1
        %s1033 = scalar_lea.sflag [#allocation8], %s1032
        %s1034 = sand.u32 %s351, 1
        %s1035 = scalar_lea.vmem [#allocation24], %s1034
        %p1036 = pneg %p364
        %p1037 = pneg %p361
        %s1038 = sand.u32 %s44, 1
        %s1039 = scalar_lea.sflag [#allocation8], %s1038
        %s1040 = sand.u32 %s377, 1
        %s1041 = scalar_lea.vmem [#allocation25], %s1040
        %p1042 = pneg %p390
        %p1043 = pneg %p387
        %s1044 = sand.u32 %s44, 1
        %s1045 = scalar_lea.sflag [#allocation8], %s1044
        %s1046 = sand.u32 %s403, 1
        %s1047 = smul.addr %s1046, 128
        %s1048 = scalar_lea.vmem [#allocation26], %s1047
        %p1049 = pneg %p416
        %p1050 = pneg %p413
        %s1051 = sand.u32 %s44, 1
        %s1052 = scalar_lea.sflag [#allocation8], %s1051
        %s1053 = sand.u32 %s429, 1
        %s1054 = scalar_lea.vmem [#allocation27], %s1053
        %p1055 = pneg %p442
        %p1056 = pneg %p439
        %p1057 = pneg %p463
        %p1058 = pneg %p460
        %p1059 = pneg %p484
        %p1060 = pneg %p481
        %p1061 = pneg %p505
        %p1062 = pneg %p502
        %p1063 = pneg %p531
        %p1064 = pneg %p528
        %s1065 = sand.u32 %s518, 1
        %s1066 = scalar_lea.sflag [#allocation9], %s1065
        %s1067 = sand.u32 %s518, 1
        %s1068 = smul.addr %s1067, 16
        %s1069 = scalar_lea.vmem [#allocation31], %s1068
        %p1070 = scmp.eq.s32.totalorder %s49, 0
        // Predicated region
        $region173: #{forward.1} parent=95 // pred_check
          %p1071 = pneg %p1070
        $region174: #{forward.1} parent=95 // pred_check_branch
          %1073 = sbr.rel (%p1071) target = $region176
        $region175: #{forward.1} parent=95 // pred_region
          %v1074 = vld [vmem:[%s857] sm:$0xff]
          %v1075 = vld [vmem:[%s857 + $0x8] sm:$0x3f]
          %v1076 = vld [vmem:[#allocation10] sm:$0xff]
          %v1077 = vld [vmem:[#allocation10 + $0x8] sm:$0xff]
          %v1078 = vld [vmem:[#allocation10 + $0x10] sm:$0xff]
          %v1079 = vld [vmem:[#allocation10 + $0x18] sm:$0xff]
          %vm1080 = vcmask 261120
          %v1082 = vsel %vm1080, %v1074, 0
          %v1085 = vsel %vm1080, %v1075, 0
          %1087 = vmatprep.subr.mxu0 0.0
          %1088 = vmatpush1.msra.mxu0 %v1076
          %1089 = vmatprep.subr.mxu0 0.0
          %1090 = vmatpush1.msra.mxu0 %v1077
          %1091 = vmatprep.subr.mxu0 0.0
          %1092 = vmatpush1.msra.mxu0 %v1078
          %1093 = vmatprep.subr.mxu0 0.0
          %1094 = vmatpush1.msra.mxu0 %v1079
          %1095 = vmatprep.subr.mxu0 0.0
          %1096 = vmatpush1.msra.mxu0 0.0
          %1097 = vmatprep.subr.mxu0 0.0
          %1098 = vmatpush1.msra.mxu0 0.0
          %1099 = vmatprep.subr.mxu0 0.0
          %1100 = vmatpush1.msra.mxu0 0.0
          %1101 = vmatprep.subr.mxu0 0.0
          %1102 = vmatpush1.msra.mxu0 0.0
          %1103 = vmatprep.subr.mxu0 0.0
          %1104 = vmatpush1.msra.mxu0 0.0
          %1105 = vmatprep.subr.mxu0 0.0
          %1106 = vmatpush1.msra.mxu0 0.0
          %1107 = vmatprep.subr.mxu0 0.0
          %1108 = vmatpush1.msra.mxu0 0.0
          %1109 = vmatprep.subr.mxu0 0.0
          %1110 = vmatpush1.msra.mxu0 0.0
          %1111 = vmatprep.subr.mxu0 0.0
          %1112 = vmatpush1.msra.mxu0 0.0
          %1113 = vmatprep.subr.mxu0 0.0
          %1114 = vmatpush1.msra.mxu0 0.0
          %1115 = vmatprep.subr.mxu0 0.0
          %1116 = vmatpush1.msra.mxu0 0.0
          %1117 = vmatprep.subr.mxu0 0.0
          %1118 = vmatpush1.msra.mxu0 0.0
          %1119 = vmatprep.subr.mxu0 0.0
          %1120 = vmatpush1.msra.mxu0 0.0
          %1121 = vmatprep.subr.mxu0 0.0
          %1122 = vmatpush1.msra.mxu0 0.0
          %1123 = vmatprep.subr.mxu0 0.0
          %1124 = vmatpush1.msra.mxu0 0.0
          %1125 = vmatprep.subr.mxu0 0.0
          %1126 = vmatpush1.msra.mxu0 0.0
          %1127 = vmatprep.subr.mxu0 0.0
          %1128 = vmatpush1.msra.mxu0 0.0
          %1129 = vmatprep.subr.mxu0 0.0
          %1130 = vmatpush1.msra.mxu0 0.0
          %1131 = vmatprep.subr.mxu0 0.0
          %1132 = vmatpush1.msra.mxu0 0.0
          %1133 = vmatprep.subr.mxu0 0.0
          %1134 = vmatpush1.msra.mxu0 0.0
          %1135 = vmatprep.subr.mxu0 0.0
          %1136 = vmatpush1.msra.mxu0 0.0
          %1137 = vmatprep.subr.mxu0 0.0
          %1138 = vmatpush1.msra.mxu0 0.0
          %1139 = vmatprep.subr.mxu0 0.0
          %1140 = vmatpush1.msra.mxu0 0.0
          %1141 = vmatprep.subr.mxu0 0.0
          %1142 = vmatpush1.msra.mxu0 0.0
          %1143 = vmatprep.subr.mxu0 0.0
          %1144 = vmatpush1.msra.mxu0 0.0
          %1145 = vmatprep.subr.mxu0 0.0
          %1146 = vmatpush1.msra.mxu0 0.0
          %1147 = vmatprep.subr.mxu0 0.0
          %1148 = vmatpush1.msra.mxu0 0.0
          %1149 = vmatprep.subr.mxu0 0.0
          %1150 = vmatpush1.msra.mxu0 0.0
          %1151 = vmatprep.mubr.f32.mxu0 0.0
          %1152 = vmatmul.mubr.f32.gmra.mrb[0].mxu0 %v1082
          %v1153 = vpop.f32.mrb[0].mxu0
          %v1154 = vadd.f32 0.0, %v1153
          %v1155 = vpop.f32.mrb[0].mxu0
          %1156 = vmatprep.mubr.f32.mxu0 0.0
          %1157 = vmatmul.mubr.f32.gmra.mrb[0].mxu0 %v1085
          %v1158 = vpop.f32.mrb[0].mxu0
          %v1159 = vadd.f32 0.0, %v1158
          %v1160 = vpop.f32.mrb[0].mxu0
          %1161 = vdwg.mxu0
          %vm1162 = vcmask 523264
          %1163 = vst.msk [vmem:[#allocation2] sm:$0xff] %vm1162, %v1154
          %vm1164 = vcmask 521216
          %1165 = vst.msk [vmem:[#allocation2 + $0x8] sm:$0x3f] %vm1164, %v1159
          %v1166 = vld [vmem:[#allocation12] sm:$0x1]
          %v1167 = vld [vmem:[#allocation13] sm:$0x1]
          %v1168 = vsel %vm1162, %v1154, 0.0
          %v1169 = vsel %vm1164, %v1159, 0.0
          %v1170 = vadd.f32 %v1168, %v1169
          %1171 = vadd.xlane.f32.xlu0 %v1170
          %v1172 = vpop.xlane.xlu0 %1171
          %v1173 = vrot.slane %v1172, 4
          %v1174 = vadd.f32 %v1172, %v1173
          %v1175 = vrot.slane %v1174, 2
          %v1176 = vadd.f32 %v1174, %v1175
          %v1177 = vrot.slane %v1176, 1
          %v1178 = vadd.f32 %v1176, %v1177
          %s1179 = vtos %v1178
          %v1180 = vrcp.pop 896.0
          %s1181 = vtos %v1180
          %s1182 = smul.f32 %s1179, %s1181
          %v1183 = vmul.f32 %v1154, %v1154
          %v1184 = vmul.f32 %v1159, %v1159
          %v1185 = vsel %vm1162, %v1183, 0.0
          %v1186 = vsel %vm1164, %v1184, 0.0
          %v1187 = vadd.f32 %v1185, %v1186
          %1188 = vadd.xlane.f32.xlu0 %v1187
          %v1189 = vpop.xlane.xlu0 %1188
          %v1190 = vrot.slane %v1189, 4
          %v1191 = vadd.f32 %v1189, %v1190
          %v1192 = vrot.slane %v1191, 2
          %v1193 = vadd.f32 %v1191, %v1192
          %v1194 = vrot.slane %v1193, 1
          %v1195 = vadd.f32 %v1193, %v1194
          %s1196 = vtos %v1195
          %v1197 = vrcp.pop 896.0
          %s1198 = vtos %v1197
          %s1199 = smul.f32 %s1196, %s1198
          %s1200 = smul.f32 %s1182, %s1182
          %s1201 = ssub.f32 %s1199, %s1200
          %s1202 = smax.f32 %s1201, 0.0
          %v1203 = vstv %s1182
          %v1204 = vsub.f32 %v1154, %v1203
          %v1205 = vsub.f32 %v1159, %v1203
          %s1206 = sadd.f32 %s1202, 1e-08
          %v1207 = vstv %s1206
          %v1208 = vrsqrt.pop %v1207
          %s1209 = vtos %v1208
          %v1210 = vstv %s1209
          %v1211 = vmul.f32 %v1204, %v1210
          %v1212 = vmul.f32 %v1205, %v1210
          %v1214 = vlaneseq
          %v1215 = vshrl.u32 %v1214, 7
          %v1216 = vsub.s32 0, %v1215
          %v1217 = vrot.slane %v1166, %v1216
          %v1219 = vmul.f32 %v1211, %v1217
          %v1220 = vmul.f32 %v1212, %v1217
          %v1222 = vlaneseq
          %v1223 = vshrl.u32 %v1222, 7
          %v1224 = vsub.s32 0, %v1223
          %v1225 = vrot.slane %v1167, %v1224
          %v1227 = vadd.f32 %v1219, %v1225
          %v1228 = vadd.f32 %v1220, %v1225
          %v1229 = vld [vmem:[#allocation15] sm:$0xff]
          %v1230 = vld [vmem:[#allocation15 + $0x8] sm:$0xff]
          %v1231 = vld [vmem:[#allocation15 + $0x10] sm:$0xff]
          %v1232 = vld [vmem:[#allocation15 + $0x18] sm:$0xff]
          %v1233 = vld [vmem:[#allocation15 + $0x20] sm:$0xff]
          %v1234 = vld [vmem:[#allocation15 + $0x28] sm:$0xff]
          %v1235 = vld [vmem:[#allocation15 + $0x30] sm:$0xff]
          %v1236 = vld [vmem:[#allocation15 + $0x38] sm:$0xff]
          %v1237 = vld [vmem:[#allocation16] sm:$0x1]
          %v1239 = vlaneseq
          %v1240 = vshrl.u32 %v1239, 7
          %v1241 = vsub.s32 0, %v1240
          %v1242 = vrot.slane %v1237, %v1241
          %v1245 = vsel %vm1162, %v1227, 0
          %v1248 = vsel %vm1162, %v1228, 0
          %1250 = vmatprep.subr.mxu0 0.0
          %1251 = vmatpush1.msra.mxu0 %v1229
          %1252 = vmatprep.subr.mxu0 0.0
          %1253 = vmatpush1.msra.mxu0 %v1230
          %1254 = vmatprep.subr.mxu0 0.0
          %1255 = vmatpush1.msra.mxu0 %v1231
          %1256 = vmatprep.subr.mxu0 0.0
          %1257 = vmatpush1.msra.mxu0 %v1232
          %1258 = vmatprep.subr.mxu0 0.0
          %1259 = vmatpush1.msra.mxu0 %v1233
          %1260 = vmatprep.subr.mxu0 0.0
          %1261 = vmatpush1.msra.mxu0 %v1234
          %1262 = vmatprep.subr.mxu0 0.0
          %1263 = vmatpush1.msra.mxu0 %v1235
          %1264 = vmatprep.subr.mxu0 0.0
          %1265 = vmatpush1.msra.mxu0 %v1236
          %1266 = vmatprep.subr.mxu0 0.0
          %1267 = vmatpush1.msra.mxu0 0.0
          %1268 = vmatprep.subr.mxu0 0.0
          %1269 = vmatpush1.msra.mxu0 0.0
          %1270 = vmatprep.subr.mxu0 0.0
          %1271 = vmatpush1.msra.mxu0 0.0
          %1272 = vmatprep.subr.mxu0 0.0
          %1273 = vmatpush1.msra.mxu0 0.0
          %1274 = vmatprep.subr.mxu0 0.0
          %1275 = vmatpush1.msra.mxu0 0.0
          %1276 = vmatprep.subr.mxu0 0.0
          %1277 = vmatpush1.msra.mxu0 0.0
          %1278 = vmatprep.subr.mxu0 0.0
          %1279 = vmatpush1.msra.mxu0 0.0
          %1280 = vmatprep.subr.mxu0 0.0
          %1281 = vmatpush1.msra.mxu0 0.0
          %1282 = vmatprep.subr.mxu0 0.0
          %1283 = vmatpush1.msra.mxu0 0.0
          %1284 = vmatprep.subr.mxu0 0.0
          %1285 = vmatpush1.msra.mxu0 0.0
          %1286 = vmatprep.subr.mxu0 0.0
          %1287 = vmatpush1.msra.mxu0 0.0
          %1288 = vmatprep.subr.mxu0 0.0
          %1289 = vmatpush1.msra.mxu0 0.0
          %1290 = vmatprep.subr.mxu0 0.0
          %1291 = vmatpush1.msra.mxu0 0.0
          %1292 = vmatprep.subr.mxu0 0.0
          %1293 = vmatpush1.msra.mxu0 0.0
          %1294 = vmatprep.subr.mxu0 0.0
          %1295 = vmatpush1.msra.mxu0 0.0
          %1296 = vmatprep.subr.mxu0 0.0
          %1297 = vmatpush1.msra.mxu0 0.0
          %1298 = vmatprep.subr.mxu0 0.0
          %1299 = vmatpush1.msra.mxu0 0.0
          %1300 = vmatprep.subr.mxu0 0.0
          %1301 = vmatpush1.msra.mxu0 0.0
          %1302 = vmatprep.subr.mxu0 0.0
          %1303 = vmatpush1.msra.mxu0 0.0
          %1304 = vmatprep.subr.mxu0 0.0
          %1305 = vmatpush1.msra.mxu0 0.0
          %1306 = vmatprep.subr.mxu0 0.0
          %1307 = vmatpush1.msra.mxu0 0.0
          %1308 = vmatprep.subr.mxu0 0.0
          %1309 = vmatpush1.msra.mxu0 0.0
          %1310 = vmatprep.subr.mxu0 0.0
          %1311 = vmatpush1.msra.mxu0 0.0
          %1312 = vmatprep.subr.mxu0 0.0
          %1313 = vmatpush1.msra.mxu0 0.0
          %1314 = vmatprep.mubr.f32.mxu0 0.0
          %1315 = vmatmul.mubr.f32.gmra.mrb[0].mxu0 %v1245
          %v1316 = vpop.f32.mrb[0].mxu0
          %v1317 = vadd.f32 %v1242, %v1316
          %v1318 = vpop.f32.mrb[0].mxu0
          %1319 = vmatprep.mubr.f32.mxu0 0.0
          %1320 = vmatmul.mubr.f32.gmra.mrb[0].mxu0 %v1248
          %v1321 = vpop.f32.mrb[0].mxu0
          %v1322 = vadd.f32 %v1242, %v1321
          %v1323 = vpop.f32.mrb[0].mxu0
          %1324 = vdwg.mxu0
          %1325 = vst.msk [vmem:[#allocation3] sm:$0xff] %vm1162, %v1317
          %1326 = vst.msk [vmem:[#allocation3 + $0x8] sm:$0x3f] %vm1164, %v1322
          %1327 = vst [vmem:[#allocation4] sm:$0xff] 0.0
          %1328 = vst [vmem:[#allocation4 + $0x16] sm:$0x3] 0.0
        $region176: #{forward.1} parent=95 // pred_fallthru
          _
        %s1329 = sld [smem:[#allocation6 + %s49]]
        %v1330 = vld [vmem:[#allocation3] sm:$0xff]
        %v1331 = vld [vmem:[#allocation3 + $0x8] sm:$0x3f]
        %v1332 = vld [vmem:[%s886] sm:$0xff]
        %v1333 = vld [vmem:[%s886 + $0x8] sm:$0xff]
        %v1334 = vld [vmem:[%s886 + $0x10] sm:$0xff]
        %v1335 = vld [vmem:[%s886 + $0x18] sm:$0xff]
        %v1336 = vld [vmem:[%s886 + $0x20] sm:$0xff]
        %v1337 = vld [vmem:[%s886 + $0x28] sm:$0xff]
        %v1338 = vld [vmem:[%s886 + $0x30] sm:$0xff]
        %v1339 = vld [vmem:[%s886 + $0x38] sm:$0xff]
        %v1340 = vld [vmem:[%s894] sm:$0x1]
        %v1342 = vlaneseq
        %v1343 = vshrl.u32 %v1342, 7
        %v1344 = vsub.s32 0, %v1343
        %v1345 = vrot.slane %v1340, %v1344
        %vm1347 = vcmask 523264
        %v1349 = vsel %vm1347, %v1330, 0
        %v1352 = vsel %vm1347, %v1331, 0
        %1354 = vmatprep.subr.mxu0 0.0
        %1355 = vmatpush1.msra.mxu0 %v1332
        %1356 = vmatprep.subr.mxu0 0.0
        %1357 = vmatpush1.msra.mxu0 %v1333
        %1358 = vmatprep.subr.mxu0 0.0
        %1359 = vmatpush1.msra.mxu0 %v1334
        %1360 = vmatprep.subr.mxu0 0.0
        %1361 = vmatpush1.msra.mxu0 %v1335
        %1362 = vmatprep.subr.mxu0 0.0
        %1363 = vmatpush1.msra.mxu0 %v1336
        %1364 = vmatprep.subr.mxu0 0.0
        %1365 = vmatpush1.msra.mxu0 %v1337
        %1366 = vmatprep.subr.mxu0 0.0
        %1367 = vmatpush1.msra.mxu0 %v1338
        %1368 = vmatprep.subr.mxu0 0.0
        %1369 = vmatpush1.msra.mxu0 %v1339
        %1370 = vmatprep.subr.mxu0 0.0
        %1371 = vmatpush1.msra.mxu0 0.0
        %1372 = vmatprep.subr.mxu0 0.0
        %1373 = vmatpush1.msra.mxu0 0.0
        %1374 = vmatprep.subr.mxu0 0.0
        %1375 = vmatpush1.msra.mxu0 0.0
        %1376 = vmatprep.subr.mxu0 0.0
        %1377 = vmatpush1.msra.mxu0 0.0
        %1378 = vmatprep.subr.mxu0 0.0
        %1379 = vmatpush1.msra.mxu0 0.0
        %1380 = vmatprep.subr.mxu0 0.0
        %1381 = vmatpush1.msra.mxu0 0.0
        %1382 = vmatprep.subr.mxu0 0.0
        %1383 = vmatpush1.msra.mxu0 0.0
        %1384 = vmatprep.subr.mxu0 0.0
        %1385 = vmatpush1.msra.mxu0 0.0
        %1386 = vmatprep.subr.mxu0 0.0
        %1387 = vmatpush1.msra.mxu0 0.0
        %1388 = vmatprep.subr.mxu0 0.0
        %1389 = vmatpush1.msra.mxu0 0.0
        %1390 = vmatprep.subr.mxu0 0.0
        %1391 = vmatpush1.msra.mxu0 0.0
        %1392 = vmatprep.subr.mxu0 0.0
        %1393 = vmatpush1.msra.mxu0 0.0
        %1394 = vmatprep.subr.mxu0 0.0
        %1395 = vmatpush1.msra.mxu0 0.0
        %1396 = vmatprep.subr.mxu0 0.0
        %1397 = vmatpush1.msra.mxu0 0.0
        %1398 = vmatprep.subr.mxu0 0.0
        %1399 = vmatpush1.msra.mxu0 0.0
        %1400 = vmatprep.subr.mxu0 0.0
        %1401 = vmatpush1.msra.mxu0 0.0
        %1402 = vmatprep.subr.mxu0 0.0
        %1403 = vmatpush1.msra.mxu0 0.0
        %1404 = vmatprep.subr.mxu0 0.0
        %1405 = vmatpush1.msra.mxu0 0.0
        %1406 = vmatprep.subr.mxu0 0.0
        %1407 = vmatpush1.msra.mxu0 0.0
        %1408 = vmatprep.subr.mxu0 0.0
        %1409 = vmatpush1.msra.mxu0 0.0
        %1410 = vmatprep.subr.mxu0 0.0
        %1411 = vmatpush1.msra.mxu0 0.0
        %1412 = vmatprep.subr.mxu0 0.0
        %1413 = vmatpush1.msra.mxu0 0.0
        %1414 = vmatprep.subr.mxu0 0.0
        %1415 = vmatpush1.msra.mxu0 0.0
        %1416 = vmatprep.subr.mxu0 0.0
        %1417 = vmatpush1.msra.mxu0 0.0
        %1418 = vmatprep.mubr.f32.mxu0 0.0
        %1419 = vmatmul.mubr.f32.gmra.mrb[0].mxu0 %v1349
        %v1420 = vpop.f32.mrb[0].mxu0
        %v1421 = vadd.f32 %v1345, %v1420
        %v1422 = vpop.f32.mrb[0].mxu0
        %1423 = vmatprep.mubr.f32.mxu0 0.0
        %1424 = vmatmul.mubr.f32.gmra.mrb[0].mxu0 %v1352
        %v1425 = vpop.f32.mrb[0].mxu0
        %v1426 = vadd.f32 %v1345, %v1425
        %v1427 = vpop.f32.mrb[0].mxu0
        %1428 = vdwg.mxu0
        %vm1429 = vcmp.ge.f32.partialorder %v1421, 0.0
        %vm1430 = vcmp.ge.f32.partialorder %v1426, 0.0
        %v1431 = vmul.f32 %v1421, 0.25
        %v1432 = vmul.f32 %v1426, 0.25
        %v1433 = vsel %vm1429, %v1421, %v1431
        %v1434 = vsel %vm1430, %v1426, %v1432
        %v1435 = vld [vmem:[%s902] sm:$0x1]
        %v1436 = vld [vmem:[%s910] sm:$0x1]
        %vm1437 = vcmask 1045504
        %v1438 = vsel %vm1437, %v1434, 0.0
        %v1439 = vadd.f32 %v1433, %v1438
        %1440 = vadd.xlane.f32.xlu0 %v1439
        %v1441 = vpop.xlane.xlu0 %1440
        %v1442 = vrot.slane %v1441, 4
        %v1443 = vadd.f32 %v1441, %v1442
        %v1444 = vrot.slane %v1443, 2
        %v1445 = vadd.f32 %v1443, %v1444
        %v1446 = vrot.slane %v1445, 1
        %v1447 = vadd.f32 %v1445, %v1446
        %s1448 = vtos %v1447
        %v1449 = vrcp.pop 1792.0
        %s1450 = vtos %v1449
        %s1451 = smul.f32 %s1448, %s1450
        %v1452 = vmul.f32 %v1433, %v1433
        %v1453 = vmul.f32 %v1434, %v1434
        %v1454 = vsel %vm1437, %v1453, 0.0
        %v1455 = vadd.f32 %v1452, %v1454
        %1456 = vadd.xlane.f32.xlu0 %v1455
        %v1457 = vpop.xlane.xlu0 %1456
        %v1458 = vrot.slane %v1457, 4
        %v1459 = vadd.f32 %v1457, %v1458
        %v1460 = vrot.slane %v1459, 2
        %v1461 = vadd.f32 %v1459, %v1460
        %v1462 = vrot.slane %v1461, 1
        %v1463 = vadd.f32 %v1461, %v1462
        %s1464 = vtos %v1463
        %v1465 = vrcp.pop 1792.0
        %s1466 = vtos %v1465
        %s1467 = smul.f32 %s1464, %s1466
        %s1468 = smul.f32 %s1451, %s1451
        %s1469 = ssub.f32 %s1467, %s1468
        %s1470 = smax.f32 %s1469, 0.0
        %v1471 = vstv %s1451
        %v1472 = vsub.f32 %v1433, %v1471
        %v1473 = vsub.f32 %v1434, %v1471
        %s1474 = sadd.f32 %s1470, 1e-08
        %v1475 = vstv %s1474
        %v1476 = vrsqrt.pop %v1475
        %s1477 = vtos %v1476
        %v1478 = vstv %s1477
        %v1479 = vmul.f32 %v1472, %v1478
        %v1480 = vmul.f32 %v1473, %v1478
        %v1482 = vlaneseq
        %v1483 = vshrl.u32 %v1482, 7
        %v1484 = vsub.s32 0, %v1483
        %v1485 = vrot.slane %v1435, %v1484
        %v1487 = vmul.f32 %v1479, %v1485
        %v1488 = vmul.f32 %v1480, %v1485
        %v1490 = vlaneseq
        %v1491 = vshrl.u32 %v1490, 7
        %v1492 = vsub.s32 0, %v1491
        %v1493 = vrot.slane %v1436, %v1492
        %v1495 = vadd.f32 %v1487, %v1493
        %v1496 = vadd.f32 %v1488, %v1493
        %1497 = vst [vmem:[#allocation4 + $0x8] sm:$0xff] %v1495
        %1498 = vst [vmem:[#allocation4 + $0x10] sm:$0x3f] %v1496
        %v1499 = vld [vmem:[%s919] sm:$0x7]
        %s1500 = ssub.s32 8, %s1329
        %s1501 = scalar_lea.vmem [#allocation4], %s1500
        %v1502 = vld [vmem:[%s1501] sm:$0xff]
        %v1503 = vld [vmem:[%s1501 + $0x8] sm:$0x3f]
        %v1504 = vlaneseq
        %v1505 = vshrl.u32 %v1504, 7
        %v1506 = vsub.s32 0, %v1505
        %v1507 = vrot.slane %v1499, %v1506
        %v1508 = vmul.f32 %v1502, %v1507
        %v1509 = vmul.f32 %v1503, %v1507
        %v1510 = vld [vmem:[#allocation4 + $0x8] sm:$0xff]
        %v1511 = vld [vmem:[#allocation4 + $0x10] sm:$0x3f]
        %v1512 = vlaneseq
        %v1513 = vshrl.u32 %v1512, 7
        %v1514 = vsub.s32 1, %v1513
        %v1515 = vrot.slane %v1499, %v1514
        %v1516 = vmul.f32 %v1510, %v1515
        %v1517 = vmul.f32 %v1511, %v1515
        %v1518 = vadd.f32 %v1508, %v1516
        %v1519 = vadd.f32 %v1509, %v1517
        %s1520 = smul.u32 %s1329, 2
        %s1521 = sadd.s32 %s1500, %s1520
        %s1522 = scalar_lea.vmem [#allocation4], %s1521
        %v1523 = vld [vmem:[%s1522] sm:$0xff]
        %v1524 = vld [vmem:[%s1522 + $0x8] sm:$0x3f]
        %v1525 = vlaneseq
        %v1526 = vshrl.u32 %v1525, 7
        %v1527 = vsub.s32 2, %v1526
        %v1528 = vrot.slane %v1499, %v1527
        %v1529 = vmul.f32 %v1523, %v1528
        %v1530 = vmul.f32 %v1524, %v1528
        %v1531 = vadd.f32 %v1518, %v1529
        %v1532 = vadd.f32 %v1519, %v1530
        %v1533 = vld [vmem:[%s927] sm:$0x1]
        %v1535 = vlaneseq
        %v1536 = vshrl.u32 %v1535, 7
        %v1537 = vsub.s32 0, %v1536
        %v1538 = vrot.slane %v1533, %v1537
        %v1540 = vadd.f32 %v1531, %v1538
        %v1541 = vadd.f32 %v1532, %v1538
        %vm1542 = vcmp.ge.f32.partialorder %v1540, 0.0
        %vm1543 = vcmp.ge.f32.partialorder %v1541, 0.0
        %v1544 = vmul.f32 %v1540, 0.25
        %v1545 = vmul.f32 %v1541, 0.25
        %v1546 = vsel %vm1542, %v1540, %v1544
        %v1547 = vsel %vm1543, %v1541, %v1545
        %v1548 = vld [vmem:[%s935] sm:$0x1]
        %v1549 = vld [vmem:[%s943] sm:$0x1]
        %v1550 = vsel %vm1437, %v1547, 0.0
        %v1551 = vadd.f32 %v1546, %v1550
        %1552 = vadd.xlane.f32.xlu0 %v1551
        %v1553 = vpop.xlane.xlu0 %1552
        %v1554 = vrot.slane %v1553, 4
        %v1555 = vadd.f32 %v1553, %v1554
        %v1556 = vrot.slane %v1555, 2
        %v1557 = vadd.f32 %v1555, %v1556
        %v1558 = vrot.slane %v1557, 1
        %v1559 = vadd.f32 %v1557, %v1558
        %s1560 = vtos %v1559
        %v1561 = vrcp.pop 1792.0
        %s1562 = vtos %v1561
        %s1563 = smul.f32 %s1560, %s1562
        %v1564 = vmul.f32 %v1546, %v1546
        %v1565 = vmul.f32 %v1547, %v1547
        %v1566 = vsel %vm1437, %v1565, 0.0
        %v1567 = vadd.f32 %v1564, %v1566
        %1568 = vadd.xlane.f32.xlu0 %v1567
        %v1569 = vpop.xlane.xlu0 %1568
        %v1570 = vrot.slane %v1569, 4
        %v1571 = vadd.f32 %v1569, %v1570
        %v1572 = vrot.slane %v1571, 2
        %v1573 = vadd.f32 %v1571, %v1572
        %v1574 = vrot.slane %v1573, 1
        %v1575 = vadd.f32 %v1573, %v1574
        %s1576 = vtos %v1575
        %v1577 = vrcp.pop 1792.0
        %s1578 = vtos %v1577
        %s1579 = smul.f32 %s1576, %s1578
        %s1580 = smul.f32 %s1563, %s1563
        %s1581 = ssub.f32 %s1579, %s1580
        %s1582 = smax.f32 %s1581, 0.0
        %v1583 = vstv %s1563
        %v1584 = vsub.f32 %v1546, %v1583
        %v1585 = vsub.f32 %v1547, %v1583
        %s1586 = sadd.f32 %s1582, 1e-08
        %v1587 = vstv %s1586
        %v1588 = vrsqrt.pop %v1587
        %s1589 = vtos %v1588
        %v1590 = vstv %s1589
        %v1591 = vmul.f32 %v1584, %v1590
        %v1592 = vmul.f32 %v1585, %v1590
        %v1594 = vlaneseq
        %v1595 = vshrl.u32 %v1594, 7
        %v1596 = vsub.s32 0, %v1595
        %v1597 = vrot.slane %v1548, %v1596
        %v1599 = vmul.f32 %v1591, %v1597
        %v1600 = vmul.f32 %v1592, %v1597
        %v1602 = vlaneseq
        %v1603 = vshrl.u32 %v1602, 7
        %v1604 = vsub.s32 0, %v1603
        %v1605 = vrot.slane %v1549, %v1604
        %v1607 = vadd.f32 %v1599, %v1605
        %v1608 = vadd.f32 %v1600, %v1605
        %v1609 = vld [vmem:[%s952] sm:$0xff]
        %v1610 = vld [vmem:[%s952 + $0x8] sm:$0xff]
        %v1611 = vld [vmem:[%s952 + $0x10] sm:$0xff]
        %v1612 = vld [vmem:[%s952 + $0x18] sm:$0xff]
        %v1613 = vld [vmem:[%s952 + $0x20] sm:$0xff]
        %v1614 = vld [vmem:[%s952 + $0x28] sm:$0xff]
        %v1615 = vld [vmem:[%s952 + $0x30] sm:$0xff]
        %v1616 = vld [vmem:[%s952 + $0x38] sm:$0xff]
        %v1617 = vld [vmem:[%s952 + $0x40] sm:$0xff]
        %v1618 = vld [vmem:[%s952 + $0x48] sm:$0xff]
        %v1619 = vld [vmem:[%s952 + $0x50] sm:$0xff]
        %v1620 = vld [vmem:[%s952 + $0x58] sm:$0xff]
        %v1621 = vld [vmem:[%s952 + $0x60] sm:$0xff]
        %v1622 = vld [vmem:[%s952 + $0x68] sm:$0xff]
        %v1623 = vld [vmem:[%s952 + $0x70] sm:$0xff]
        %v1624 = vld [vmem:[%s952 + $0x78] sm:$0xff]
        %v1625 = vld [vmem:[%s960] sm:$0x1]
        %v1627 = vlaneseq
        %v1628 = vshrl.u32 %v1627, 7
        %v1629 = vsub.s32 0, %v1628
        %v1630 = vrot.slane %v1625, %v1629
        %1632 = vmatprep.subr.mxu0 0.0
        %1633 = vmatpush1.msra.mxu0 %v1609
        %1634 = vmatprep.subr.mxu0 0.0
        %1635 = vmatpush1.msra.mxu0 %v1610
        %1636 = vmatprep.subr.mxu0 0.0
        %1637 = vmatpush1.msra.mxu0 %v1611
        %1638 = vmatprep.subr.mxu0 0.0
        %1639 = vmatpush1.msra.mxu0 %v1612
        %1640 = vmatprep.subr.mxu0 0.0
        %1641 = vmatpush1.msra.mxu0 %v1613
        %1642 = vmatprep.subr.mxu0 0.0
        %1643 = vmatpush1.msra.mxu0 %v1614
        %1644 = vmatprep.subr.mxu0 0.0
        %1645 = vmatpush1.msra.mxu0 %v1615
        %1646 = vmatprep.subr.mxu0 0.0
        %1647 = vmatpush1.msra.mxu0 %v1616
        %1648 = vmatprep.subr.mxu0 0.0
        %1649 = vmatpush1.msra.mxu0 %v1617
        %1650 = vmatprep.subr.mxu0 0.0
        %1651 = vmatpush1.msra.mxu0 %v1618
        %1652 = vmatprep.subr.mxu0 0.0
        %1653 = vmatpush1.msra.mxu0 %v1619
        %1654 = vmatprep.subr.mxu0 0.0
        %1655 = vmatpush1.msra.mxu0 %v1620
        %1656 = vmatprep.subr.mxu0 0.0
        %1657 = vmatpush1.msra.mxu0 %v1621
        %1658 = vmatprep.subr.mxu0 0.0
        %1659 = vmatpush1.msra.mxu0 %v1622
        %1660 = vmatprep.subr.mxu0 0.0
        %1661 = vmatpush1.msra.mxu0 %v1623
        %1662 = vmatprep.subr.mxu0 0.0
        %1663 = vmatpush1.msra.mxu0 %v1624
        %1664 = vmatprep.subr.mxu0 0.0
        %1665 = vmatpush1.msra.mxu0 0.0
        %1666 = vmatprep.subr.mxu0 0.0
        %1667 = vmatpush1.msra.mxu0 0.0
        %1668 = vmatprep.subr.mxu0 0.0
        %1669 = vmatpush1.msra.mxu0 0.0
        %1670 = vmatprep.subr.mxu0 0.0
        %1671 = vmatpush1.msra.mxu0 0.0
        %1672 = vmatprep.subr.mxu0 0.0
        %1673 = vmatpush1.msra.mxu0 0.0
        %1674 = vmatprep.subr.mxu0 0.0
        %1675 = vmatpush1.msra.mxu0 0.0
        %1676 = vmatprep.subr.mxu0 0.0
        %1677 = vmatpush1.msra.mxu0 0.0
        %1678 = vmatprep.subr.mxu0 0.0
        %1679 = vmatpush1.msra.mxu0 0.0
        %1680 = vmatprep.subr.mxu0 0.0
        %1681 = vmatpush1.msra.mxu0 0.0
        %1682 = vmatprep.subr.mxu0 0.0
        %1683 = vmatpush1.msra.mxu0 0.0
        %1684 = vmatprep.subr.mxu0 0.0
        %1685 = vmatpush1.msra.mxu0 0.0
        %1686 = vmatprep.subr.mxu0 0.0
        %1687 = vmatpush1.msra.mxu0 0.0
        %1688 = vmatprep.subr.mxu0 0.0
        %1689 = vmatpush1.msra.mxu0 0.0
        %1690 = vmatprep.subr.mxu0 0.0
        %1691 = vmatpush1.msra.mxu0 0.0
        %1692 = vmatprep.subr.mxu0 0.0
        %1693 = vmatpush1.msra.mxu0 0.0
        %1694 = vmatprep.subr.mxu0 0.0
        %1695 = vmatpush1.msra.mxu0 0.0
        %1696 = vmatprep.mubr.f32.mxu0 0.0
        %1697 = vmatmul.mubr.f32.gmra.mrb[0].mxu0 %v1607
        %v1698 = vpop.f32.mrb[0].mxu0
        %v1699 = vadd.f32 %v1630, %v1698
        %v1700 = vpop.f32.mrb[0].mxu0
        %1701 = vmatprep.mubr.f32.mxu0 0.0
        %1702 = vmatmul.mubr.f32.gmra.mrb[0].mxu0 %v1608
        %v1703 = vpop.f32.mrb[0].mxu0
        %v1704 = vadd.f32 %v1630, %v1703
        %v1705 = vpop.f32.mrb[0].mxu0
        %1706 = vdwg.mxu0
        %v1707 = vadd.f32 %v1330, %v1699
        %v1708 = vadd.f32 %v1331, %v1704
        %1709 = vst.msk [vmem:[#allocation3] sm:$0xff] %vm1347, %v1707
        %vm1710 = vcmask 521216
        %1711 = vst.msk [vmem:[#allocation3 + $0x8] sm:$0x3f] %vm1710, %v1708
        %p1712 = scmp.eq.s32.totalorder %s49, 3
        // Predicated region
        $region177: #{forward.1} parent=95 // pred_check
          %p1713 = pneg %p1712
        $region178: #{forward.1} parent=95 // pred_check_branch
          %1715 = sbr.rel (%p1713) target = $region180
        $region179: #{forward.1} parent=95 // pred_region
          %v1716 = vld [vmem:[#allocation3] sm:$0xff]
          %v1717 = vld [vmem:[#allocation3 + $0x8] sm:$0x3f]
          %vm1718 = vcmp.ge.f32.partialorder %v1716, 0.0
          %vm1719 = vcmp.ge.f32.partialorder %v1717, 0.0
          %v1720 = vmul.f32 %v1716, 0.25
          %v1721 = vmul.f32 %v1717, 0.25
          %v1722 = vsel %vm1718, %v1716, %v1720
          %v1723 = vsel %vm1719, %v1717, %v1721
          %v1724 = vld [vmem:[#allocation28] sm:$0xff]
          %v1725 = vld [vmem:[#allocation28 + $0x8] sm:$0xff]
          %v1726 = vld [vmem:[#allocation28 + $0x10] sm:$0xff]
          %v1727 = vld [vmem:[#allocation28 + $0x18] sm:$0xff]
          %v1728 = vld [vmem:[#allocation28 + $0x20] sm:$0xff]
          %v1729 = vld [vmem:[#allocation28 + $0x28] sm:$0xff]
          %v1730 = vld [vmem:[#allocation28 + $0x30] sm:$0xff]
          %v1731 = vld [vmem:[#allocation28 + $0x38] sm:$0xff]
          %v1732 = vld [vmem:[#allocation29] sm:$0x1]
          %v1734 = vlaneseq
          %v1735 = vshrl.u32 %v1734, 7
          %v1736 = vsub.s32 0, %v1735
          %v1737 = vrot.slane %v1732, %v1736
          %v1740 = vsel %vm1347, %v1722, 0
          %v1743 = vsel %vm1347, %v1723, 0
          %1745 = vmatprep.subr.mxu0 0.0
          %1746 = vmatpush1.msra.mxu0 %v1724
          %1747 = vmatprep.subr.mxu0 0.0
          %1748 = vmatpush1.msra.mxu0 %v1725
          %1749 = vmatprep.subr.mxu0 0.0
          %1750 = vmatpush1.msra.mxu0 %v1726
          %1751 = vmatprep.subr.mxu0 0.0
          %1752 = vmatpush1.msra.mxu0 %v1727
          %1753 = vmatprep.subr.mxu0 0.0
          %1754 = vmatpush1.msra.mxu0 %v1728
          %1755 = vmatprep.subr.mxu0 0.0
          %1756 = vmatpush1.msra.mxu0 %v1729
          %1757 = vmatprep.subr.mxu0 0.0
          %1758 = vmatpush1.msra.mxu0 %v1730
          %1759 = vmatprep.subr.mxu0 0.0
          %1760 = vmatpush1.msra.mxu0 %v1731
          %1761 = vmatprep.subr.mxu0 0.0
          %1762 = vmatpush1.msra.mxu0 0.0
          %1763 = vmatprep.subr.mxu0 0.0
          %1764 = vmatpush1.msra.mxu0 0.0
          %1765 = vmatprep.subr.mxu0 0.0
          %1766 = vmatpush1.msra.mxu0 0.0
          %1767 = vmatprep.subr.mxu0 0.0
          %1768 = vmatpush1.msra.mxu0 0.0
          %1769 = vmatprep.subr.mxu0 0.0
          %1770 = vmatpush1.msra.mxu0 0.0
          %1771 = vmatprep.subr.mxu0 0.0
          %1772 = vmatpush1.msra.mxu0 0.0
          %1773 = vmatprep.subr.mxu0 0.0
          %1774 = vmatpush1.msra.mxu0 0.0
          %1775 = vmatprep.subr.mxu0 0.0
          %1776 = vmatpush1.msra.mxu0 0.0
          %1777 = vmatprep.subr.mxu0 0.0
          %1778 = vmatpush1.msra.mxu0 0.0
          %1779 = vmatprep.subr.mxu0 0.0
          %1780 = vmatpush1.msra.mxu0 0.0
          %1781 = vmatprep.subr.mxu0 0.0
          %1782 = vmatpush1.msra.mxu0 0.0
          %1783 = vmatprep.subr.mxu0 0.0
          %1784 = vmatpush1.msra.mxu0 0.0
          %1785 = vmatprep.subr.mxu0 0.0
          %1786 = vmatpush1.msra.mxu0 0.0
          %1787 = vmatprep.subr.mxu0 0.0
          %1788 = vmatpush1.msra.mxu0 0.0
          %1789 = vmatprep.subr.mxu0 0.0
          %1790 = vmatpush1.msra.mxu0 0.0
          %1791 = vmatprep.subr.mxu0 0.0
          %1792 = vmatpush1.msra.mxu0 0.0
          %1793 = vmatprep.subr.mxu0 0.0
          %1794 = vmatpush1.msra.mxu0 0.0
          %1795 = vmatprep.subr.mxu0 0.0
          %1796 = vmatpush1.msra.mxu0 0.0
          %1797 = vmatprep.subr.mxu0 0.0
          %1798 = vmatpush1.msra.mxu0 0.0
          %1799 = vmatprep.subr.mxu0 0.0
          %1800 = vmatpush1.msra.mxu0 0.0
          %1801 = vmatprep.subr.mxu0 0.0
          %1802 = vmatpush1.msra.mxu0 0.0
          %1803 = vmatprep.subr.mxu0 0.0
          %1804 = vmatpush1.msra.mxu0 0.0
          %1805 = vmatprep.subr.mxu0 0.0
          %1806 = vmatpush1.msra.mxu0 0.0
          %1807 = vmatprep.subr.mxu0 0.0
          %1808 = vmatpush1.msra.mxu0 0.0
          %1809 = vmatprep.mubr.f32.mxu0 0.0
          %1810 = vmatmul.mubr.f32.gmra.mrb[0].mxu0 %v1740
          %v1811 = vpop.f32.mrb[0].mxu0
          %v1812 = vadd.f32 %v1737, %v1811
          %v1813 = vpop.f32.mrb[0].mxu0
          %1814 = vmatprep.mubr.f32.mxu0 0.0
          %1815 = vmatmul.mubr.f32.gmra.mrb[0].mxu0 %v1743
          %v1816 = vpop.f32.mrb[0].mxu0
          %v1817 = vadd.f32 %v1737, %v1816
          %v1818 = vpop.f32.mrb[0].mxu0
          %1819 = vdwg.mxu0
          %v1820 = vld [vmem:[#allocation2] sm:$0xff]
          %v1821 = vld [vmem:[#allocation2 + $0x8] sm:$0x3f]
          %1824 = vrot.lane.b32.xlu0 %v1820, 64
          %v1825 = vpop.permute.xlu0 %1824
          %1826 = vrot.lane.b32.xlu0 %v1821, 64
          %v1827 = vpop.permute.xlu0 %1826
          %v1830 = vsel %vm1347, %v1820, %v1825
          %v1831 = vsel %vm1347, %v1821, %v1827
          %v1832 = vxor.u32 %v1812, 2147483648
          %v1833 = vxor.u32 %v1817, 2147483648
          %v1834 = vmul.f32 %v1832, 1.442695
          %v1835 = vpow.pop %v1834
          %v1836 = vmul.f32 %v1833, 1.442695
          %v1837 = vpow.pop %v1836
          %v1838 = vadd.f32 %v1835, 1.0
          %v1839 = vadd.f32 %v1837, 1.0
          %v1840 = vrcp.pop %v1838
          %v1841 = vmul.f32 1.0, %v1840
          %v1842 = vrcp.pop %v1839
          %v1843 = vmul.f32 1.0, %v1842
          %v1844 = vmul.f32 %v1830, %v1841
          %v1845 = vmul.f32 %v1831, %v1843
          %v1846 = vld [vmem:[#allocation30] sm:$0xff]
          %v1847 = vld [vmem:[#allocation30 + $0x8] sm:$0xff]
          %v1848 = vld [vmem:[#allocation30 + $0x10] sm:$0xff]
          %v1849 = vld [vmem:[#allocation30 + $0x18] sm:$0xff]
          %v1850 = vld [vmem:[#allocation30 + $0x20] sm:$0xff]
          %v1851 = vld [vmem:[#allocation30 + $0x28] sm:$0xff]
          %v1852 = vld [vmem:[#allocation30 + $0x30] sm:$0xff]
          %v1853 = vld [vmem:[#allocation30 + $0x38] sm:$0xff]
          %v1854 = vld [vmem:[#allocation30 + $0x40] sm:$0xff]
          %v1855 = vld [vmem:[#allocation30 + $0x48] sm:$0xff]
          %v1856 = vld [vmem:[#allocation30 + $0x50] sm:$0xff]
          %v1857 = vld [vmem:[#allocation30 + $0x58] sm:$0xff]
          %v1858 = vld [vmem:[#allocation30 + $0x60] sm:$0xff]
          %v1859 = vld [vmem:[#allocation30 + $0x68] sm:$0xff]
          %v1860 = vld [vmem:[#allocation30 + $0x70] sm:$0xff]
          %v1861 = vld [vmem:[#allocation30 + $0x78] sm:$0xff]
          %1862 = vmatprep.subr.mxu0 0.0
          %1863 = vmatpush1.msra.mxu0 %v1846
          %1864 = vmatprep.subr.mxu0 0.0
          %1865 = vmatpush1.msra.mxu0 %v1847
          %1866 = vmatprep.subr.mxu0 0.0
          %1867 = vmatpush1.msra.mxu0 %v1848
          %1868 = vmatprep.subr.mxu0 0.0
          %1869 = vmatpush1.msra.mxu0 %v1849
          %1870 = vmatprep.subr.mxu0 0.0
          %1871 = vmatpush1.msra.mxu0 %v1850
          %1872 = vmatprep.subr.mxu0 0.0
          %1873 = vmatpush1.msra.mxu0 %v1851
          %1874 = vmatprep.subr.mxu0 0.0
          %1875 = vmatpush1.msra.mxu0 %v1852
          %1876 = vmatprep.subr.mxu0 0.0
          %1877 = vmatpush1.msra.mxu0 %v1853
          %1878 = vmatprep.subr.mxu0 0.0
          %1879 = vmatpush1.msra.mxu0 %v1854
          %1880 = vmatprep.subr.mxu0 0.0
          %1881 = vmatpush1.msra.mxu0 %v1855
          %1882 = vmatprep.subr.mxu0 0.0
          %1883 = vmatpush1.msra.mxu0 %v1856
          %1884 = vmatprep.subr.mxu0 0.0
          %1885 = vmatpush1.msra.mxu0 %v1857
          %1886 = vmatprep.subr.mxu0 0.0
          %1887 = vmatpush1.msra.mxu0 %v1858
          %1888 = vmatprep.subr.mxu0 0.0
          %1889 = vmatpush1.msra.mxu0 %v1859
          %1890 = vmatprep.subr.mxu0 0.0
          %1891 = vmatpush1.msra.mxu0 %v1860
          %1892 = vmatprep.subr.mxu0 0.0
          %1893 = vmatpush1.msra.mxu0 %v1861
          %1894 = vmatprep.subr.mxu0 0.0
          %1895 = vmatpush1.msra.mxu0 0.0
          %1896 = vmatprep.subr.mxu0 0.0
          %1897 = vmatpush1.msra.mxu0 0.0
          %1898 = vmatprep.subr.mxu0 0.0
          %1899 = vmatpush1.msra.mxu0 0.0
          %1900 = vmatprep.subr.mxu0 0.0
          %1901 = vmatpush1.msra.mxu0 0.0
          %1902 = vmatprep.subr.mxu0 0.0
          %1903 = vmatpush1.msra.mxu0 0.0
          %1904 = vmatprep.subr.mxu0 0.0
          %1905 = vmatpush1.msra.mxu0 0.0
          %1906 = vmatprep.subr.mxu0 0.0
          %1907 = vmatpush1.msra.mxu0 0.0
          %1908 = vmatprep.subr.mxu0 0.0
          %1909 = vmatpush1.msra.mxu0 0.0
          %1910 = vmatprep.subr.mxu0 0.0
          %1911 = vmatpush1.msra.mxu0 0.0
          %1912 = vmatprep.subr.mxu0 0.0
          %1913 = vmatpush1.msra.mxu0 0.0
          %1914 = vmatprep.subr.mxu0 0.0
          %1915 = vmatpush1.msra.mxu0 0.0
          %1916 = vmatprep.subr.mxu0 0.0
          %1917 = vmatpush1.msra.mxu0 0.0
          %1918 = vmatprep.subr.mxu0 0.0
          %1919 = vmatpush1.msra.mxu0 0.0
          %1920 = vmatprep.subr.mxu0 0.0
          %1921 = vmatpush1.msra.mxu0 0.0
          %1922 = vmatprep.subr.mxu0 0.0
          %1923 = vmatpush1.msra.mxu0 0.0
          %1924 = vmatprep.subr.mxu0 0.0
          %1925 = vmatpush1.msra.mxu0 0.0
          %1926 = vmatprep.mubr.f32.mxu0 0.0
          %1927 = vmatmul.mubr.f32.gmra.mrb[0].mxu0 %v1844
          %v1928 = vpop.f32.mrb[0].mxu0
          %v1929 = vadd.f32 0.0, %v1928
          %v1930 = vpop.f32.mrb[0].mxu0
          %1931 = vmatprep.mubr.f32.mxu0 0.0
          %1932 = vmatmul.mubr.f32.gmra.mrb[0].mxu0 %v1845
          %v1933 = vpop.f32.mrb[0].mxu0
          %v1934 = vadd.f32 0.0, %v1933
          %v1935 = vpop.f32.mrb[0].mxu0
          %1936 = vdwg.mxu0
          %1937 = vst.msk [vmem:[%s1069] sm:$0xff] %vm1347, %v1929
          %1938 = vst.msk [vmem:[%s1069 + $0x8] sm:$0x3f] %vm1710, %v1934
        $region180: #{forward.1} parent=95 // pred_fallthru
          _
        %s1939 = sand.u32 %s518, 1
        %s1940 = scalar_lea.sflag [#allocation9], %s1939
        %s1941 = sand.u32 %s518, 1
        %s1942 = smul.addr %s1941, 16
        %s1943 = scalar_lea.vmem [#allocation31], %s1942
        // Predicated region
        $region181: #{forward.1} parent=95 // pred_check
          %p1944 = pneg %p528
        $region182: #{forward.1} parent=95 // pred_check_branch
          %1946 = sbr.rel (%p1944) target = $region184
        $region183: #{forward.1} parent=95 // pred_region
          %s1948 = ssub.s32 256, 256
          %1949 = vsyncadd %s1940, %s1948
          %s1950 = smul.addr %s48, 2
          %s1951 = smul.addr %s1950, 128
          %s1952 = scalar_lea.hbm %s20, %s1951
          %s1953 = sshll.u32 %s1943, 4
          %s1954 = int_to_ptr.vmem [resolvable:$true] %s1953
          %1959 = dma.vmem_to_hbm [thread:$0]  %s1954, 256, %s1952, %s1940, 128, 128, 8
        $region184: #{forward.1} parent=95 // pred_fallthru
          _
      $region96: #{forward.1} parent=5 // pred_fallthru
        _
      %p1960 = scmp.le.s32.totalorder 2, %s39
      // Predicated region
      $region185: #{forward.1} parent=5 // pred_check
        %p1961 = pneg %p1960
      $region186: #{forward.1} parent=5 // pred_check_branch
        %1963 = sbr.rel (%p1961) target = $region188
      $region187: #{forward.1} parent=5 // pred_region
        %s1964 = ssub.s32 %s39, 2
        // Predicated region
        $region189: #{forward.1} parent=187 // pred_check
          %p1965 = pneg %p534
        $region190: #{forward.1} parent=187 // pred_check_branch
          %1967 = sbr.rel (%p1965) target = $region192
        $region191: #{forward.1} parent=187 // pred_region
          %s1968 = sand.u32 %s519, 1
          %s1969 = scalar_lea.sflag [#allocation9], %s1968
          %s1970 = sand.u32 %s519, 1
          %s1971 = smul.addr %s1970, 16
          %s1972 = scalar_lea.vmem [#allocation31], %s1971
          %1973 = dma.done %s1969, 256
        $region192: #{forward.1} parent=187 // pred_fallthru
          _
      $region188: #{forward.1} parent=5 // pred_fallthru
        _
    $region6: #{forward.1} parent=1 // loop_footer
      %s43 = sadd.s32 1, %s39
    $region7: #{forward.1} parent=1 // loop_footer_branch
      %38 = sbr.rel target = $region3
    $region8: #{forward.1} parent=1 // loop_exit
      _
    %1974 = vsyncpa [#allocation8], 1
    %s1975 = scalar_lea.sflag [#allocation8], 1
    %1976 = vsyncpa %s1975, 1
    %1977 = vsyncpa [#allocation11], 1
    %1978 = vsyncpa [#allocation14], 1
    %1979 = vsyncpa [#allocation17], 1
    %1980 = vsyncpa [#allocation9], 1
    %s1981 = scalar_lea.sflag [#allocation9], 1
    %1982 = vsyncpa %s1981, 1

</llo_original>
